<compile_context>
chip_gen: v7x
topology: tpu7x:2x2x1
jax: 0.10.0
libtpu: 0.0.40
codegen_flags: <defaults>
</compile_context>

<pallas_src>
import functools

import jax
import jax.numpy as jnp
from jax.experimental import pallas as pl
from jax.experimental.pallas import tpu as pltpu


def _conv_bn_kernel(x_ref, w_ref, s_ref, b_ref, o_ref, *, cin, kh, kw, oh, ow):
    # x_ref: (Cin, H, W)      f32  one full image (implicit halo, read once from HBM)
    # w_ref: (TCout, K)       bf16 raw conv weights, K ordered (kh, kw, cin)
    # s_ref: (TCout, 1)       f32  BN scale  = gamma / sqrt(var + eps)
    # b_ref: (TCout, 1)       f32  folded shift = (conv_b - mean) * scale + beta
    # o_ref: (TCout, OH*OW)   f32  lane-dense output tile (flattened spatial)
    x = x_ref[...].astype(jnp.bfloat16)                       # cast in VMEM (free, mem-bound)
    # In-VMEM im2col: 9 shifted views, flattened and stacked along the K axis.
    patches = jnp.concatenate(
        [x[:, dh:dh + oh, dw:dw + ow].reshape(cin, oh * ow)
         for dh in range(kh) for dw in range(kw)],
        axis=0)                                               # (K, OH*OW), never hits HBM
    acc = jnp.dot(w_ref[...], patches, preferred_element_type=jnp.float32)
    # f32 epilogue: BN scale + (conv bias folded with BN shift).
    o_ref[...] = (acc * s_ref[...] + b_ref[...]).astype(o_ref.dtype)


def conv_block_without_relu(x_nchw, w_oihw, conv_b, gamma, beta,
                            running_mean, running_var, eps=1e-5, cout_tile=256):
    """Eval-mode forward of conv_block_without_relu.

    x_nchw: [N, Cin, H, W], w_oihw: [Cout, Cin, KH, KW]  ->  [N, Cout, OH, OW]
    """
    N, Cin, H, W = x_nchw.shape
    Cout, _, KH, KW = w_oihw.shape
    OH, OW = H - KH + 1, W - KW + 1
    K = Cin * KH * KW
    M = OH * OW

    # ---- wrapper glue (plain JAX, small one-time work; no im2col, no pad) ----
    inv_std = 1.0 / jnp.sqrt(running_var.astype(jnp.float32) + eps)
    scale = (gamma.astype(jnp.float32) * inv_std).reshape(Cout, 1)            # (Cout, 1)
    bias = ((conv_b.astype(jnp.float32) - running_mean.astype(jnp.float32))
            * scale[:, 0] + beta.astype(jnp.float32)).reshape(Cout, 1)        # (Cout, 1)

    # Raw (unscaled) weights in bf16, K ordered (kh, kw, cin) to match the kernel's
    # in-VMEM patch construction.
    w_mat = w_oihw.transpose(0, 2, 3, 1).reshape(Cout, K).astype(jnp.bfloat16)

    tc = Cout if Cout <= cout_tile else cout_tile
    assert Cout % tc == 0, "Cout must be divisible by the Cout tile"
    n_co = Cout // tc

    # VMEM budget (double-buffered pipeline blocks + in-kernel temporaries), checked
    # against an explicit limit so the config also fits v7x's 64 MiB VMEM.
    vmem_limit = 48 * 1024 * 1024
    blk_bytes = 2 * (Cin * H * W * 4 + tc * K * 2 + 2 * tc * 4 + tc * M * 4)
    blk_bytes += Cin * H * W * 2 + K * M * 2 + tc * M * 4
    assert blk_bytes < vmem_limit, (
        "VMEM budget exceeded — tile OH into halo'd row blocks (see TODO)")

    kernel = functools.partial(_conv_bn_kernel, cin=Cin, kh=KH, kw=KW, oh=OH, ow=OW)

    out_flat = pl.pallas_call(
        kernel,
        out_shape=jax.ShapeDtypeStruct((N, Cout, M), x_nchw.dtype),
        grid_spec=pltpu.PrefetchScalarGridSpec(
            num_scalar_prefetch=0,
            grid=(N, n_co),
            in_specs=[
                pl.BlockSpec((None, Cin, H, W), lambda n, co: (n, 0, 0, 0)),  # image
                pl.BlockSpec((tc, K), lambda n, co: (co, 0)),                 # weights
                pl.BlockSpec((tc, 1), lambda n, co: (co, 0)),                 # BN scale
                pl.BlockSpec((tc, 1), lambda n, co: (co, 0)),                 # folded bias
            ],
            out_specs=pl.BlockSpec((None, tc, M), lambda n, co: (n, co, 0)),
        ),
        compiler_params=pltpu.CompilerParams(
            dimension_semantics=("parallel", "parallel"),
            vmem_limit_bytes=vmem_limit),
    )(x_nchw, w_mat, scale, bias)

    # Trailing-dim split reshape only (no transpose, no pad-slice round trip).
    return out_flat.reshape(N, Cout, OH, OW)


if __name__ == "__main__":
    key = jax.random.PRNGKey(0)
    k_x, k_w, k_b, k_g, k_be, k_m, k_v = jax.random.split(key, 7)

    N, Cin, H, W = 2, 4, 16, 16
    Cout, KH, KW = 8, 3, 3

    x = jax.random.normal(k_x, (N, Cin, H, W), dtype=jnp.float32)

    fan_in = Cin * KH * KW
    bound = 1.0 / (fan_in ** 0.5)
    w = jax.random.uniform(k_w, (Cout, Cin, KH, KW),
                           minval=-bound, maxval=bound, dtype=jnp.float32)
    b = jax.random.uniform(k_b, (Cout,), minval=-bound, maxval=bound,
                           dtype=jnp.float32)
    # Non-trivial BN parameters / running stats (eval mode) to exercise the epilogue.
    gamma = jax.random.uniform(k_g, (Cout,), minval=0.5, maxval=1.5, dtype=jnp.float32)
    beta = 0.1 * jax.random.normal(k_be, (Cout,), dtype=jnp.float32)
    running_mean = 0.1 * jax.random.normal(k_m, (Cout,), dtype=jnp.float32)
    running_var = jax.random.uniform(k_v, (Cout,), minval=0.5, maxval=1.5,
                                     dtype=jnp.float32)

    out = conv_block_without_relu(x, w, b, gamma, beta, running_mean, running_var)
    out = jax.block_until_ready(out)

    # Pure-JAX f32 reference (conv + bias + eval-mode BN; dropout is identity in eval).
    ref = jax.lax.conv_general_dilated(
        x, w, window_strides=(1, 1), padding="VALID",
        dimension_numbers=("NCHW", "OIHW", "NCHW"))
    ref = ref + b.reshape(1, Cout, 1, 1)
    ref = (ref - running_mean.reshape(1, Cout, 1, 1)) / jnp.sqrt(
        running_var.reshape(1, Cout, 1, 1) + 1e-5)
    ref = ref * gamma.reshape(1, Cout, 1, 1) + beta.reshape(1, Cout, 1, 1)

    assert out.shape == (N, Cout, H - KH + 1, W - KW + 1)
    # bf16 MXU operands (f32 accumulation + f32 BN epilogue) -> bf16-level tolerance.
    assert jnp.allclose(out, ref, atol=3e-2, rtol=3e-2)

    print("KERNEL_OK")
</pallas_src>

<mosaic_0001>
module attributes {stable_mosaic.version = 11 : i64} {
  func.func @_conv_bn_kernel(%arg0: i32, %arg1: i32, %arg2: memref<1x4x16x16xf32, #tpu.memory_space<vmem>>, %arg3: memref<8x36xbf16, #tpu.memory_space<vmem>>, %arg4: memref<8x1xf32, #tpu.memory_space<vmem>>, %arg5: memref<8x1xf32, #tpu.memory_space<vmem>>, %arg6: memref<1x8x196xf32, #tpu.memory_space<vmem>>) attributes {dimension_semantics = [#tpu.dimension_semantics<parallel>, #tpu.dimension_semantics<parallel>], iteration_bounds = array<i64: 2, 1>, scalar_prefetch = 0 : i64, scratch_operands = 0 : i64, tpu.core_type = #tpu.core_type<tc>, window_params = [{transform_indices = @transform_0, window_bounds = array<i64: 1, 4, 16, 16>}, {transform_indices = @transform_1, window_bounds = array<i64: 8, 36>}, {transform_indices = @transform_2, window_bounds = array<i64: 8, 1>}, {transform_indices = @transform_3, window_bounds = array<i64: 8, 1>}, {transform_indices = @transform_4, window_bounds = array<i64: 1, 8, 196>}]} {
    %c0 = arith.constant 0 : index
    %c0_0 = arith.constant 0 : index
    %c0_1 = arith.constant 0 : index
    %c0_2 = arith.constant 0 : index
    %0 = vector.load %arg2[%c0, %c0_0, %c0_1, %c0_2] : memref<1x4x16x16xf32, #tpu.memory_space<vmem>>, vector<1x4x16x16xf32>
    %1 = vector.shape_cast %0 : vector<1x4x16x16xf32> to vector<4x16x16xf32>
    %2 = arith.truncf %1 : vector<4x16x16xf32> to vector<4x16x16xbf16>
    %3 = vector.extract_strided_slice %2 {offsets = [0, 0, 0], sizes = [4, 14, 14], strides = [1, 1, 1]} : vector<4x16x16xbf16> to vector<4x14x14xbf16>
    %4 = vector.shape_cast %3 : vector<4x14x14xbf16> to vector<4x196xbf16>
    %5 = vector.extract_strided_slice %2 {offsets = [0, 0, 1], sizes = [4, 14, 14], strides = [1, 1, 1]} : vector<4x16x16xbf16> to vector<4x14x14xbf16>
    %6 = vector.shape_cast %5 : vector<4x14x14xbf16> to vector<4x196xbf16>
    %7 = vector.extract_strided_slice %2 {offsets = [0, 0, 2], sizes = [4, 14, 14], strides = [1, 1, 1]} : vector<4x16x16xbf16> to vector<4x14x14xbf16>
    %8 = vector.shape_cast %7 : vector<4x14x14xbf16> to vector<4x196xbf16>
    %9 = vector.extract_strided_slice %2 {offsets = [0, 1, 0], sizes = [4, 14, 14], strides = [1, 1, 1]} : vector<4x16x16xbf16> to vector<4x14x14xbf16>
    %10 = vector.shape_cast %9 : vector<4x14x14xbf16> to vector<4x196xbf16>
    %11 = vector.extract_strided_slice %2 {offsets = [0, 1, 1], sizes = [4, 14, 14], strides = [1, 1, 1]} : vector<4x16x16xbf16> to vector<4x14x14xbf16>
    %12 = vector.shape_cast %11 : vector<4x14x14xbf16> to vector<4x196xbf16>
    %13 = vector.extract_strided_slice %2 {offsets = [0, 1, 2], sizes = [4, 14, 14], strides = [1, 1, 1]} : vector<4x16x16xbf16> to vector<4x14x14xbf16>
    %14 = vector.shape_cast %13 : vector<4x14x14xbf16> to vector<4x196xbf16>
    %15 = vector.extract_strided_slice %2 {offsets = [0, 2, 0], sizes = [4, 14, 14], strides = [1, 1, 1]} : vector<4x16x16xbf16> to vector<4x14x14xbf16>
    %16 = vector.shape_cast %15 : vector<4x14x14xbf16> to vector<4x196xbf16>
    %17 = vector.extract_strided_slice %2 {offsets = [0, 2, 1], sizes = [4, 14, 14], strides = [1, 1, 1]} : vector<4x16x16xbf16> to vector<4x14x14xbf16>
    %18 = vector.shape_cast %17 : vector<4x14x14xbf16> to vector<4x196xbf16>
    %19 = vector.extract_strided_slice %2 {offsets = [0, 2, 2], sizes = [4, 14, 14], strides = [1, 1, 1]} : vector<4x16x16xbf16> to vector<4x14x14xbf16>
    %20 = vector.shape_cast %19 : vector<4x14x14xbf16> to vector<4x196xbf16>
    %21 = tpu.concatenate %4, %6, %8, %10, %12, %14, %16, %18, %20 in 0 : vector<4x196xbf16>, vector<4x196xbf16>, vector<4x196xbf16>, vector<4x196xbf16>, vector<4x196xbf16>, vector<4x196xbf16>, vector<4x196xbf16>, vector<4x196xbf16>, vector<4x196xbf16> -> vector<36x196xbf16>
    %c0_3 = arith.constant 0 : index
    %c0_4 = arith.constant 0 : index
    %22 = vector.load %arg3[%c0_3, %c0_4] : memref<8x36xbf16, #tpu.memory_space<vmem>>, vector<8x36xbf16>
    %cst = arith.constant dense<0.000000e+00> : vector<8x196xf32>
    %23 = tpu.matmul %22, %21, %cst {dimension_numbers = #tpu.dot_dimension_numbers<[1], [0], [0], [1], [0, 0, 1, 1], [], []>} : vector<8x36xbf16>, vector<36x196xbf16>, vector<8x196xf32> -> vector<8x196xf32>
    %c0_5 = arith.constant 0 : index
    %c0_6 = arith.constant 0 : index
    %24 = vector.load %arg4[%c0_5, %c0_6] : memref<8x1xf32, #tpu.memory_space<vmem>>, vector<8x1xf32>
    %25 = vector.broadcast %24 : vector<8x1xf32> to vector<8x196xf32>
    %26 = arith.mulf %23, %25 : vector<8x196xf32>
    %c0_7 = arith.constant 0 : index
    %c0_8 = arith.constant 0 : index
    %27 = vector.load %arg5[%c0_7, %c0_8] : memref<8x1xf32, #tpu.memory_space<vmem>>, vector<8x1xf32>
    %28 = vector.broadcast %27 : vector<8x1xf32> to vector<8x196xf32>
    %29 = arith.addf %26, %28 : vector<8x196xf32>
    %c0_9 = arith.constant 0 : index
    %c0_10 = arith.constant 0 : index
    %c0_11 = arith.constant 0 : index
    %30 = vector.load %arg6[%c0_9, %c0_10, %c0_11] : memref<1x8x196xf32, #tpu.memory_space<vmem>>, vector<1x8x196xf32>
    %31 = vector.shape_cast %30 : vector<1x8x196xf32> to vector<8x196xf32>
    %32 = vector.shape_cast %29 : vector<8x196xf32> to vector<1x8x196xf32>
    tpu.vector_store %arg6[%c0_9, %c0_10, %c0_11], %32 {strides = array<i32>} : memref<1x8x196xf32, #tpu.memory_space<vmem>>, vector<1x8x196xf32>,
    return
  }
  func.func @transform_0(%arg0: i32, %arg1: i32) -> (i32, i32, i32, i32) {
    %c0_i32 = arith.constant 0 : i32
    %c0_i32_0 = arith.constant 0 : i32
    %c0_i32_1 = arith.constant 0 : i32
    %c0_i32_2 = arith.constant 0 : i32
    return %arg0, %c0_i32, %c0_i32_0, %c0_i32_1 : i32, i32, i32, i32
  }
  func.func @transform_1(%arg0: i32, %arg1: i32) -> (i32, i32) {
    %c0_i32 = arith.constant 0 : i32
    %c0_i32_0 = arith.constant 0 : i32
    return %arg1, %c0_i32 : i32, i32
  }
  func.func @transform_2(%arg0: i32, %arg1: i32) -> (i32, i32) {
    %c0_i32 = arith.constant 0 : i32
    %c0_i32_0 = arith.constant 0 : i32
    return %arg1, %c0_i32 : i32, i32
  }
  func.func @transform_3(%arg0: i32, %arg1: i32) -> (i32, i32) {
    %c0_i32 = arith.constant 0 : i32
    %c0_i32_0 = arith.constant 0 : i32
    return %arg1, %c0_i32 : i32, i32
  }
  func.func @transform_4(%arg0: i32, %arg1: i32) -> (i32, i32, i32) {
    %c0_i32 = arith.constant 0 : i32
    %c0_i32_0 = arith.constant 0 : i32
    return %arg0, %arg1, %c0_i32 : i32, i32, i32
  }
}

</mosaic_0001>

<llo_original>
// kernel: tpu_custom_call.1
$region0: #{tpu_custom_call.1}
  #allocation0 [shape = 'u32[]', space=smem, size = 0x4, offset = 0x4, fixed_abs, tag = 'smem constant byte address 0x4 - core index']
  #allocation1 [shape = 'u32[144,128]{1,0:T(1,128)}', space=vmem, size = 0x12000, scoped, tag = 'internal scratch']
  %s0 = inlined_call_operand.hbm [shape: f32[2,4,16,16], index: 0, kind: input, shape index: {}]
  %s1 = inlined_call_operand.vmem [shape: bf16[8,36], index: 1, kind: input, shape index: {}]
  %s2 = inlined_call_operand.vmem [shape: f32[8,1], index: 2, kind: input, shape index: {}]
  %s3 = inlined_call_operand.vmem [shape: f32[8,1], index: 3, kind: input, shape index: {}]
  %s4 = inlined_call_operand.hbm [shape: f32[2,8,196], index: 4, kind: output, shape index: {}]
  %s5 = sld [smem:[#allocation0]]
  $region53: #{tpu_custom_call.1} parent=0
    _
  %s7 = ssub.s32 1, %s5
  %s8 = scalar_select 0, %s7, %s5
  $region1: #{tpu_custom_call.1} parent=0
    #allocation2 [shape = 'u8[65536]{0}', space=vmem, size = 0x10000, scoped, tag = 'input window, operand 0']
    #allocation3 [shape = 's32[2]{0}', space=sflag, size = 0x8, scoped, tag = 'scoped memory for tpu_custom_call.1']
    #allocation4 [shape = 's32[2]{0}', space=sflag, size = 0x8, scoped, tag = 'scoped memory for tpu_custom_call.1']
    #allocation5 [shape = 'u8[16384]{0}', space=vmem, size = 0x4000, scoped, tag = 'output window, operand 0']
    %9 = vsyncpa [#allocation3], 0
    %s10 = scalar_lea.sflag [#allocation3], 1
    %11 = vsyncpa %s10, 0
    %12 = vsyncpa [#allocation4], 0
    %s13 = scalar_lea.sflag [#allocation4], 1
    %14 = vsyncpa %s13, 0
    loop: start=0, step=1, limit=4
    $region2: #{tpu_custom_call.1} parent=1 // loop_pre_header
      _
    $region3: #{tpu_custom_call.1} parent=1 // loop_header
      %s16 = sphi 0, %s20
      %p17 = scmp.ge.s32.totalorder %s16, 4
      %s23 = sphi 0, %s35
      %s24 = sphi 0, %s31
      %s25 = sphi 0, %s23
      %s26 = sphi 0, %s24
      %s27 = sphi 0, %s25
      %s28 = sphi 0, %s26
      %s38 = sphi 0, %s40
      %s41 = sphi 0, %s38
      %s42 = sphi 0, %s41
      %s58 = sphi 0, %s42
      %s64 = sphi 0, %s66
      %s67 = sphi 0, %s64
      %s68 = sphi 0, %s67
      %s84 = sphi 0, %s68
      %s90 = sphi 0, %s92
      %s93 = sphi 0, %s90
      %s94 = sphi 0, %s93
      %s110 = sphi 0, %s94
      %s116 = sphi 0, %s118
      %s119 = sphi 0, %s116
      %s120 = sphi 0, %s119
      %s136 = sphi 0, %s120
      %s144 = sphi 0, %s146
      %s147 = sphi 0, %s144
      %s148 = sphi 0, %s147
      %s164 = sphi 0, %s148
    $region4: #{tpu_custom_call.1} parent=1 // loop_header_branch
      %19 = sbr.rel (%p17) target = $region8
    $region5: #{tpu_custom_call.1} parent=1 // loop_body
      %s21 = ssub.s32 %s16, 1
      %s22 = ssub.s32 %s16, 2
      %s29 = sadd.s32 1, %s24
      %p30 = scmp.ge.s32.totalorder %s29, 1
      %s31 = scalar_select %p30, 0, %s29
      %s32 = sadd.s32 1, %s23
      %s33 = scalar_select %p30, %s32, %s23
      %p34 = scmp.ge.s32.totalorder %s33, 2
      %s35 = scalar_select %p34, 0, %s33
      %s36 = ssub.s32 %s23, %s35
      %p37 = scmp.eq.s32.totalorder %s36, 0
      %s39 = sadd.s32 %s38, 1
      %s40 = scalar_select %p37, %s38, %s39
      %p43 = pneg %p37
      %p44 = scmp.eq.s32.totalorder %s16, 1
      %p45 = por %p43, %p44
      %p46 = scmp.ne.s32.totalorder %s38, %s41
      %p47 = scmp.eq.s32.totalorder %s16, 0
      %p48 = por %p46, %p47
      %p49 = scmp.ne.s32.totalorder %s38, %s41
      %p50 = scmp.eq.s32.totalorder %s21, 1
      %p51 = por %p49, %p50
      %p52 = scmp.ne.s32.totalorder %s41, %s42
      %p53 = scmp.eq.s32.totalorder %s21, 0
      %p54 = por %p52, %p53
      %p55 = scmp.ne.s32.totalorder %s41, %s42
      %p56 = scmp.eq.s32.totalorder %s22, 1
      %p57 = por %p55, %p56
      %p59 = scmp.ne.s32.totalorder %s42, %s58
      %p60 = scmp.eq.s32.totalorder %s22, 0
      %p61 = por %p59, %p60
      %s62 = ssub.s32 %s24, %s31
      %p63 = scmp.eq.s32.totalorder %s62, 0
      %s65 = sadd.s32 %s64, 1
      %s66 = scalar_select %p63, %s64, %s65
      %p69 = pneg %p63
      %p70 = scmp.eq.s32.totalorder %s16, 1
      %p71 = por %p69, %p70
      %p72 = scmp.ne.s32.totalorder %s64, %s67
      %p73 = scmp.eq.s32.totalorder %s16, 0
      %p74 = por %p72, %p73
      %p75 = scmp.ne.s32.totalorder %s64, %s67
      %p76 = scmp.eq.s32.totalorder %s21, 1
      %p77 = por %p75, %p76
      %p78 = scmp.ne.s32.totalorder %s67, %s68
      %p79 = scmp.eq.s32.totalorder %s21, 0
      %p80 = por %p78, %p79
      %p81 = scmp.ne.s32.totalorder %s67, %s68
      %p82 = scmp.eq.s32.totalorder %s22, 1
      %p83 = por %p81, %p82
      %p85 = scmp.ne.s32.totalorder %s68, %s84
      %p86 = scmp.eq.s32.totalorder %s22, 0
      %p87 = por %p85, %p86
      %s88 = ssub.s32 %s24, %s31
      %p89 = scmp.eq.s32.totalorder %s88, 0
      %s91 = sadd.s32 %s90, 1
      %s92 = scalar_select %p89, %s90, %s91
      %p95 = pneg %p89
      %p96 = scmp.eq.s32.totalorder %s16, 1
      %p97 = por %p95, %p96
      %p98 = scmp.ne.s32.totalorder %s90, %s93
      %p99 = scmp.eq.s32.totalorder %s16, 0
      %p100 = por %p98, %p99
      %p101 = scmp.ne.s32.totalorder %s90, %s93
      %p102 = scmp.eq.s32.totalorder %s21, 1
      %p103 = por %p101, %p102
      %p104 = scmp.ne.s32.totalorder %s93, %s94
      %p105 = scmp.eq.s32.totalorder %s21, 0
      %p106 = por %p104, %p105
      %p107 = scmp.ne.s32.totalorder %s93, %s94
      %p108 = scmp.eq.s32.totalorder %s22, 1
      %p109 = por %p107, %p108
      %p111 = scmp.ne.s32.totalorder %s94, %s110
      %p112 = scmp.eq.s32.totalorder %s22, 0
      %p113 = por %p111, %p112
      %s114 = ssub.s32 %s24, %s31
      %p115 = scmp.eq.s32.totalorder %s114, 0
      %s117 = sadd.s32 %s116, 1
      %s118 = scalar_select %p115, %s116, %s117
      %p121 = pneg %p115
      %p122 = scmp.eq.s32.totalorder %s16, 1
      %p123 = por %p121, %p122
      %p124 = scmp.ne.s32.totalorder %s116, %s119
      %p125 = scmp.eq.s32.totalorder %s16, 0
      %p126 = por %p124, %p125
      %p127 = scmp.ne.s32.totalorder %s116, %s119
      %p128 = scmp.eq.s32.totalorder %s21, 1
      %p129 = por %p127, %p128
      %p130 = scmp.ne.s32.totalorder %s119, %s120
      %p131 = scmp.eq.s32.totalorder %s21, 0
      %p132 = por %p130, %p131
      %p133 = scmp.ne.s32.totalorder %s119, %s120
      %p134 = scmp.eq.s32.totalorder %s22, 1
      %p135 = por %p133, %p134
      %p137 = scmp.ne.s32.totalorder %s120, %s136
      %p138 = scmp.eq.s32.totalorder %s22, 0
      %p139 = por %p137, %p138
      %s140 = ssub.s32 %s23, %s35
      %s141 = ssub.s32 %s24, %s31
      %s142 = sor.u32 %s140, %s141
      %p143 = scmp.eq.s32.totalorder %s142, 0
      %s145 = sadd.s32 %s144, 1
      %s146 = scalar_select %p143, %s144, %s145
      %p149 = pneg %p143
      %p150 = scmp.eq.s32.totalorder %s16, 1
      %p151 = por %p149, %p150
      %p152 = scmp.ne.s32.totalorder %s144, %s147
      %p153 = scmp.eq.s32.totalorder %s16, 0
      %p154 = por %p152, %p153
      %p155 = scmp.ne.s32.totalorder %s144, %s147
      %p156 = scmp.eq.s32.totalorder %s21, 1
      %p157 = por %p155, %p156
      %p158 = scmp.ne.s32.totalorder %s147, %s148
      %p159 = scmp.eq.s32.totalorder %s21, 0
      %p160 = por %p158, %p159
      %p161 = scmp.ne.s32.totalorder %s147, %s148
      %p162 = scmp.eq.s32.totalorder %s22, 1
      %p163 = por %p161, %p162
      %p165 = scmp.ne.s32.totalorder %s148, %s164
      %p166 = scmp.eq.s32.totalorder %s22, 0
      %p167 = por %p165, %p166
      %p168 = scmp.le.s32.totalorder 1, %s16
      %p169 = scmp.lt.s32.totalorder %s16, 3
      %p170 = pnand %p168, %p169
      %p171 = pneg %p170
      // Predicated region
      $region9: #{tpu_custom_call.1} parent=5 // pred_check
        _
      $region10: #{tpu_custom_call.1} parent=5 // pred_check_branch
        %173 = sbr.rel (%p170) target = $region12
      $region11: #{tpu_custom_call.1} parent=5 // pred_region
        %s174 = ssub.s32 %s16, 1
        // Predicated region
        $region13: #{tpu_custom_call.1} parent=11 // pred_check
          %p175 = pneg %p80
        $region14: #{tpu_custom_call.1} parent=11 // pred_check_branch
          %177 = sbr.rel (%p175) target = $region16
        $region15: #{tpu_custom_call.1} parent=11 // pred_region
          %p178 = scmp.lt.s32.totalorder %s26, 0
          %s179 = scalar_select %p178, %s26, 0
          %s180 = smul.addr %s179, 4
          %s181 = scalar_lea.vmem %s1, %s180
        $region16: #{tpu_custom_call.1} parent=11 // pred_fallthru
          _
        // Predicated region
        $region17: #{tpu_custom_call.1} parent=11 // pred_check
          %p182 = pneg %p106
        $region18: #{tpu_custom_call.1} parent=11 // pred_check_branch
          %184 = sbr.rel (%p182) target = $region20
        $region19: #{tpu_custom_call.1} parent=11 // pred_region
          %p185 = scmp.lt.s32.totalorder %s26, 0
          %s186 = scalar_select %p185, %s26, 0
          %s187 = smul.addr %s186, 8
          %s188 = scalar_lea.vmem %s2, %s187
        $region20: #{tpu_custom_call.1} parent=11 // pred_fallthru
          _
        // Predicated region
        $region21: #{tpu_custom_call.1} parent=11 // pred_check
          %p189 = pneg %p132
        $region22: #{tpu_custom_call.1} parent=11 // pred_check_branch
          %191 = sbr.rel (%p189) target = $region24
        $region23: #{tpu_custom_call.1} parent=11 // pred_region
          %p192 = scmp.lt.s32.totalorder %s26, 0
          %s193 = scalar_select %p192, %s26, 0
          %s194 = smul.addr %s193, 8
          %s195 = scalar_lea.vmem %s3, %s194
        $region24: #{tpu_custom_call.1} parent=11 // pred_fallthru
          _
      $region12: #{tpu_custom_call.1} parent=5 // pred_fallthru
        _
      %p196 = scmp.lt.s32.totalorder %s16, 2
      // Predicated region
      $region25: #{tpu_custom_call.1} parent=5 // pred_check
        %p197 = pneg %p196
      $region26: #{tpu_custom_call.1} parent=5 // pred_check_branch
        %199 = sbr.rel (%p197) target = $region28
      $region27: #{tpu_custom_call.1} parent=5 // pred_region
        // Predicated region
        $region29: #{tpu_custom_call.1} parent=27 // pred_check
          %p200 = pneg %p48
        $region30: #{tpu_custom_call.1} parent=27 // pred_check_branch
          %202 = sbr.rel (%p200) target = $region32
        $region31: #{tpu_custom_call.1} parent=27 // pred_region
          %s203 = sand.u32 %s38, 1
          %s204 = scalar_lea.sflag [#allocation3], %s203
          %s205 = sand.u32 %s38, 1
          %s206 = smul.addr %s205, 64
          %s207 = scalar_lea.vmem [#allocation2], %s206
          %s209 = ssub.s32 1024, 1024
          %210 = vsyncadd %s204, %s209
          %s211 = smul.addr %s23, 8
          %s212 = smul.addr %s211, 128
          %s213 = scalar_lea.hbm %s0, %s212
          %s214 = sshll.u32 %s207, 4
          %s215 = int_to_ptr.vmem [resolvable:$true] %s214
          %220 = dma.hbm_to_vmem [thread:$0]  %s213, 1024, %s215, %s204, 128, 128, 8
        $region32: #{tpu_custom_call.1} parent=27 // pred_fallthru
          _
      $region28: #{tpu_custom_call.1} parent=5 // pred_fallthru
        _
      %p221 = scmp.le.s32.totalorder 1, %s16
      %p222 = scmp.lt.s32.totalorder %s16, 3
      %p223 = pnand %p221, %p222
      %p224 = pneg %p223
      // Predicated region
      $region33: #{tpu_custom_call.1} parent=5 // pred_check
        _
      $region34: #{tpu_custom_call.1} parent=5 // pred_check_branch
        %226 = sbr.rel (%p223) target = $region36
      $region35: #{tpu_custom_call.1} parent=5 // pred_region
        %s227 = ssub.s32 %s16, 1
        %s228 = sand.u32 %s41, 1
        %s229 = scalar_lea.sflag [#allocation3], %s228
        %s230 = sand.u32 %s41, 1
        %s231 = smul.addr %s230, 64
        %s232 = scalar_lea.vmem [#allocation2], %s231
        // Predicated region
        $region37: #{tpu_custom_call.1} parent=35 // pred_check
          %p233 = pneg %p54
        $region38: #{tpu_custom_call.1} parent=35 // pred_check_branch
          %235 = sbr.rel (%p233) target = $region40
        $region39: #{tpu_custom_call.1} parent=35 // pred_region
          %236 = dma.done %s229, 1024
        $region40: #{tpu_custom_call.1} parent=35 // pred_fallthru
          _
        %s237 = sand.u32 %s41, 1
        %s238 = scalar_lea.sflag [#allocation3], %s237
        %s239 = sand.u32 %s41, 1
        %s240 = smul.addr %s239, 64
        %s241 = scalar_lea.vmem [#allocation2], %s240
        %p242 = pneg %p54
        %p243 = pneg %p51
        %p244 = scmp.lt.s32.totalorder %s26, 0
        %s245 = scalar_select %p244, %s26, 0
        %s246 = smul.addr %s245, 4
        %s247 = scalar_lea.vmem %s1, %s246
        %p248 = pneg %p80
        %p249 = pneg %p77
        %p250 = scmp.lt.s32.totalorder %s26, 0
        %s251 = scalar_select %p250, %s26, 0
        %s252 = smul.addr %s251, 8
        %s253 = scalar_lea.vmem %s2, %s252
        %p254 = pneg %p106
        %p255 = pneg %p103
        %p256 = scmp.lt.s32.totalorder %s26, 0
        %s257 = scalar_select %p256, %s26, 0
        %s258 = smul.addr %s257, 8
        %s259 = scalar_lea.vmem %s3, %s258
        %p260 = pneg %p132
        %p261 = pneg %p129
        %p262 = pneg %p160
        %p263 = pneg %p157
        %s264 = sand.u32 %s147, 1
        %s265 = scalar_lea.sflag [#allocation4], %s264
        %s266 = sand.u32 %s147, 1
        %s267 = smul.addr %s266, 16
        %s268 = scalar_lea.vmem [#allocation5], %s267
        %p269 = scmp.lt.s32.totalorder %s26, 0
        %s270 = scalar_select %p269, %s26, 0
        %s271 = smul.addr %s270, 4
        %s272 = scalar_lea.vmem %s1, %s271
        %p273 = scmp.lt.s32.totalorder %s26, 0
        %s274 = scalar_select %p273, %s26, 0
        %s275 = smul.addr %s274, 8
        %s276 = scalar_lea.vmem %s2, %s275
        %p277 = scmp.lt.s32.totalorder %s26, 0
        %s278 = scalar_select %p277, %s26, 0
        %s279 = smul.addr %s278, 8
        %s280 = scalar_lea.vmem %s3, %s279
        %v282 = vld [vmem:[%s232] sm:$0xff]
        %v283 = vld [vmem:[%s232 + $0x8] sm:$0xff]
        %v284 = vld [vmem:[%s232 + $0x10] sm:$0xff]
        %v285 = vld [vmem:[%s232 + $0x18] sm:$0xff]
        %v286 = vld [vmem:[%s232 + $0x20] sm:$0xff]
        %v287 = vld [vmem:[%s232 + $0x28] sm:$0xff]
        %v288 = vld [vmem:[%s232 + $0x30] sm:$0xff]
        %v289 = vld [vmem:[%s232 + $0x38] sm:$0xff]
        %v290 = vpack.c.bf16 %v283, %v282
        %v291 = vpack.c.bf16 %v285, %v284
        %v292 = vpack.c.bf16 %v287, %v286
        %v293 = vpack.c.bf16 %v289, %v288
        %v294 = vcombine.high %v290, 0
        %v296 = vunpack.c.l.s4 1983009808
        %v297 = vunpack.c.0.s8 %v296
        %v298 = vlaneseq
        %v299 = vshrl.u32 %v298, 7
        %v300 = vsub.s32 %v297, %v299
        %v301 = vrot.slane %v290, %v300
        %v303 = vunpack.c.l.s4 1983009808
        %v304 = vunpack.c.0.s8 %v303
        %v305 = vlaneseq
        %v306 = vshrl.u32 %v305, 7
        %v307 = vsub.s32 %v304, %v306
        %v308 = vrot.slane %v294, %v307
        %v309 = vcombine.high %v292, 0
        %v311 = vunpack.c.l.s4 1983009808
        %v312 = vunpack.c.0.s8 %v311
        %v313 = vlaneseq
        %v314 = vshrl.u32 %v313, 7
        %v315 = vsub.s32 %v312, %v314
        %v316 = vrot.slane %v292, %v315
        %v318 = vunpack.c.l.s4 1983009808
        %v319 = vunpack.c.0.s8 %v318
        %v320 = vlaneseq
        %v321 = vshrl.u32 %v320, 7
        %v322 = vsub.s32 %v319, %v321
        %v323 = vrot.slane %v309, %v322
        %v324 = vcombine.low %v301, %v316
        %v325 = vcombine.high %v301, %v316
        %v327 = vunpack.c.l.s4 1934713408
        %v328 = vunpack.c.0.s8 %v327
        %v329 = vlaneseq
        %v330 = vshrl.u32 %v329, 7
        %v331 = vsub.s32 %v328, %v330
        %v332 = vrot.slane %v324, %v331
        %v334 = vunpack.c.l.s4 1934713408
        %v335 = vunpack.c.0.s8 %v334
        %v336 = vlaneseq
        %v337 = vshrl.u32 %v336, 7
        %v338 = vsub.s32 %v335, %v337
        %v339 = vrot.slane %v325, %v338
        %v340 = vcombine.low %v308, %v323
        %v341 = vcombine.high %v308, %v323
        %v343 = vunpack.c.l.s4 1934713408
        %v344 = vunpack.c.0.s8 %v343
        %v345 = vlaneseq
        %v346 = vshrl.u32 %v345, 7
        %v347 = vsub.s32 %v344, %v346
        %v348 = vrot.slane %v340, %v347
        %v349 = vcombine.high %v332, 0
        %v350 = vcombine.high %v339, 0
        %v351 = vcombine.high %v348, 0
        %v353 = vunpack.c.l.s4 1934713408
        %v354 = vunpack.c.0.s8 %v353
        %v355 = vlaneseq
        %v356 = vshrl.u32 %v355, 7
        %v357 = vsub.s32 %v354, %v356
        %v358 = vrot.slane %v341, %v357
        %v359 = vcombine.high %v291, 0
        %v361 = vunpack.c.l.s4 1983009808
        %v362 = vunpack.c.0.s8 %v361
        %v363 = vlaneseq
        %v364 = vshrl.u32 %v363, 7
        %v365 = vsub.s32 %v362, %v364
        %v366 = vrot.slane %v291, %v365
        %v368 = vunpack.c.l.s4 1983009808
        %v369 = vunpack.c.0.s8 %v368
        %v370 = vlaneseq
        %v371 = vshrl.u32 %v370, 7
        %v372 = vsub.s32 %v369, %v371
        %v373 = vrot.slane %v359, %v372
        %v374 = vcombine.high %v293, 0
        %v376 = vunpack.c.l.s4 1983009808
        %v377 = vunpack.c.0.s8 %v376
        %v378 = vlaneseq
        %v379 = vshrl.u32 %v378, 7
        %v380 = vsub.s32 %v377, %v379
        %v381 = vrot.slane %v293, %v380
        %v383 = vunpack.c.l.s4 1983009808
        %v384 = vunpack.c.0.s8 %v383
        %v385 = vlaneseq
        %v386 = vshrl.u32 %v385, 7
        %v387 = vsub.s32 %v384, %v386
        %v388 = vrot.slane %v374, %v387
        %v389 = vcombine.low %v366, %v381
        %v390 = vcombine.high %v366, %v381
        %v392 = vunpack.c.l.s4 1934713408
        %v393 = vunpack.c.0.s8 %v392
        %v394 = vlaneseq
        %v395 = vshrl.u32 %v394, 7
        %v396 = vsub.s32 %v393, %v395
        %v397 = vrot.slane %v389, %v396
        %v399 = vunpack.c.l.s4 1934713408
        %v400 = vunpack.c.0.s8 %v399
        %v401 = vlaneseq
        %v402 = vshrl.u32 %v401, 7
        %v403 = vsub.s32 %v400, %v402
        %v404 = vrot.slane %v390, %v403
        %v405 = vcombine.low %v373, %v388
        %v406 = vcombine.high %v373, %v388
        %v408 = vunpack.c.l.s4 1934713408
        %v409 = vunpack.c.0.s8 %v408
        %v410 = vlaneseq
        %v411 = vshrl.u32 %v410, 7
        %v412 = vsub.s32 %v409, %v411
        %v413 = vrot.slane %v405, %v412
        %v414 = vcombine.high %v397, 0
        %v415 = vcombine.high %v404, 0
        %v416 = vcombine.high %v413, 0
        %v418 = vunpack.c.l.s4 1934713408
        %v419 = vunpack.c.0.s8 %v418
        %v420 = vlaneseq
        %v421 = vshrl.u32 %v420, 7
        %v422 = vsub.s32 %v419, %v421
        %v423 = vrot.slane %v406, %v422
        %v426 = vpack.i.b16 %v397, %v332
        %v427 = vshrl.u32 %v332, 16
        %v428 = vshrl.u32 %v397, 16
        %v429 = vpack.i.b16 %v428, %v427
        %v432 = vpack.i.b16 %v414, %v349
        %v433 = vshrl.u32 %v349, 16
        %v434 = vshrl.u32 %v414, 16
        %v435 = vpack.i.b16 %v434, %v433
        %v438 = vpack.i.b16 %v404, %v339
        %v439 = vshrl.u32 %v339, 16
        %v440 = vshrl.u32 %v404, 16
        %v441 = vpack.i.b16 %v440, %v439
        %v444 = vpack.i.b16 %v415, %v350
        %v445 = vshrl.u32 %v350, 16
        %v446 = vshrl.u32 %v415, 16
        %v447 = vpack.i.b16 %v446, %v445
        %v450 = vpack.i.b16 %v413, %v348
        %v451 = vshrl.u32 %v348, 16
        %v452 = vshrl.u32 %v413, 16
        %v453 = vpack.i.b16 %v452, %v451
        %v456 = vpack.i.b16 %v416, %v351
        %v457 = vshrl.u32 %v351, 16
        %v458 = vshrl.u32 %v416, 16
        %v459 = vpack.i.b16 %v458, %v457
        %v462 = vpack.i.b16 %v423, %v358
        %v463 = vshrl.u32 %v358, 16
        %v464 = vshrl.u32 %v423, 16
        %v465 = vpack.i.b16 %v464, %v463
        %466 = vrot.lane.b32.xlu0 %v429, 14
        %v467 = vpop.permute.xlu0 %466
        %468 = vrot.lane.b32.xlu0 %v432, 28
        %v469 = vpop.permute.xlu0 %468
        %470 = vrot.lane.b32.xlu0 %v435, 42
        %v471 = vpop.permute.xlu0 %470
        %472 = vrot.lane.b32.xlu0 %v438, 56
        %v473 = vpop.permute.xlu0 %472
        %474 = vrot.lane.b32.xlu0 %v441, 70
        %v475 = vpop.permute.xlu0 %474
        %476 = vrot.lane.b32.xlu0 %v444, 84
        %v477 = vpop.permute.xlu0 %476
        %478 = vrot.lane.b32.xlu0 %v447, 98
        %v479 = vpop.permute.xlu0 %478
        %480 = vrot.lane.b32.xlu0 %v450, 112
        %v481 = vpop.permute.xlu0 %480
        %482 = vrot.lane.b32.xlu0 %v453, 126
        %v483 = vpop.permute.xlu0 %482
        %484 = vrot.lane.b32.xlu0 %v456, 12
        %v485 = vpop.permute.xlu0 %484
        %486 = vrot.lane.b32.xlu0 %v459, 26
        %v487 = vpop.permute.xlu0 %486
        %488 = vrot.lane.b32.xlu0 %v462, 40
        %v489 = vpop.permute.xlu0 %488
        %490 = vrot.lane.b32.xlu0 %v465, 54
        %v491 = vpop.permute.xlu0 %490
        %vm492 = vcmask 113664
        %v495 = vsel %vm492, %v426, %v467
        %vm496 = vcmask 228352
        %v498 = vsel %vm496, %v495, %v469
        %vm499 = vcmask 343040
        %v501 = vsel %vm499, %v498, %v471
        %vm502 = vcmask 457728
        %v504 = vsel %vm502, %v501, %v473
        %vm505 = vcmask 572416
        %v507 = vsel %vm505, %v504, %v475
        %vm508 = vcmask 687104
        %v510 = vsel %vm508, %v507, %v477
        %vm511 = vcmask 801792
        %v513 = vsel %vm511, %v510, %v479
        %vm514 = vcmask 916480
        %v516 = vsel %vm514, %v513, %v481
        %vm517 = vcmask 1031168
        %v519 = vsel %vm517, %v516, %v483
        %vm520 = vcmask 97280
        %v522 = vsel %vm520, %v483, %v485
        %vm523 = vcmask 211968
        %v525 = vsel %vm523, %v522, %v487
        %vm526 = vcmask 326656
        %v528 = vsel %vm526, %v525, %v489
        %vm529 = vcmask 441344
        %v531 = vsel %vm529, %v528, %v491
        %536 = vrot.lane.b32.xlu0 %v290, 127
        %v537 = vpop.permute.xlu0 %536
        %538 = vrot.lane.b32.xlu0 %v291, 127
        %v539 = vpop.permute.xlu0 %538
        %540 = vrot.lane.b32.xlu0 %v292, 127
        %v541 = vpop.permute.xlu0 %540
        %542 = vrot.lane.b32.xlu0 %v293, 127
        %v543 = vpop.permute.xlu0 %542
        %v548 = vcombine.high %v537, 0
        %v550 = vunpack.c.l.s4 1983009808
        %v551 = vunpack.c.0.s8 %v550
        %v552 = vlaneseq
        %v553 = vshrl.u32 %v552, 7
        %v554 = vsub.s32 %v551, %v553
        %v555 = vrot.slane %v537, %v554
        %v557 = vunpack.c.l.s4 1983009808
        %v558 = vunpack.c.0.s8 %v557
        %v559 = vlaneseq
        %v560 = vshrl.u32 %v559, 7
        %v561 = vsub.s32 %v558, %v560
        %v562 = vrot.slane %v548, %v561
        %v563 = vcombine.high %v541, 0
        %v565 = vunpack.c.l.s4 1983009808
        %v566 = vunpack.c.0.s8 %v565
        %v567 = vlaneseq
        %v568 = vshrl.u32 %v567, 7
        %v569 = vsub.s32 %v566, %v568
        %v570 = vrot.slane %v541, %v569
        %v572 = vunpack.c.l.s4 1983009808
        %v573 = vunpack.c.0.s8 %v572
        %v574 = vlaneseq
        %v575 = vshrl.u32 %v574, 7
        %v576 = vsub.s32 %v573, %v575
        %v577 = vrot.slane %v563, %v576
        %v578 = vcombine.low %v555, %v570
        %v579 = vcombine.high %v555, %v570
        %v581 = vunpack.c.l.s4 1934713408
        %v582 = vunpack.c.0.s8 %v581
        %v583 = vlaneseq
        %v584 = vshrl.u32 %v583, 7
        %v585 = vsub.s32 %v582, %v584
        %v586 = vrot.slane %v578, %v585
        %v588 = vunpack.c.l.s4 1934713408
        %v589 = vunpack.c.0.s8 %v588
        %v590 = vlaneseq
        %v591 = vshrl.u32 %v590, 7
        %v592 = vsub.s32 %v589, %v591
        %v593 = vrot.slane %v579, %v592
        %v594 = vcombine.low %v562, %v577
        %v595 = vcombine.high %v562, %v577
        %v597 = vunpack.c.l.s4 1934713408
        %v598 = vunpack.c.0.s8 %v597
        %v599 = vlaneseq
        %v600 = vshrl.u32 %v599, 7
        %v601 = vsub.s32 %v598, %v600
        %v602 = vrot.slane %v594, %v601
        %v603 = vcombine.high %v586, 0
        %v604 = vcombine.high %v593, 0
        %v605 = vcombine.high %v602, 0
        %v607 = vunpack.c.l.s4 1934713408
        %v608 = vunpack.c.0.s8 %v607
        %v609 = vlaneseq
        %v610 = vshrl.u32 %v609, 7
        %v611 = vsub.s32 %v608, %v610
        %v612 = vrot.slane %v595, %v611
        %v613 = vcombine.high %v539, 0
        %v615 = vunpack.c.l.s4 1983009808
        %v616 = vunpack.c.0.s8 %v615
        %v617 = vlaneseq
        %v618 = vshrl.u32 %v617, 7
        %v619 = vsub.s32 %v616, %v618
        %v620 = vrot.slane %v539, %v619
        %v622 = vunpack.c.l.s4 1983009808
        %v623 = vunpack.c.0.s8 %v622
        %v624 = vlaneseq
        %v625 = vshrl.u32 %v624, 7
        %v626 = vsub.s32 %v623, %v625
        %v627 = vrot.slane %v613, %v626
        %v628 = vcombine.high %v543, 0
        %v630 = vunpack.c.l.s4 1983009808
        %v631 = vunpack.c.0.s8 %v630
        %v632 = vlaneseq
        %v633 = vshrl.u32 %v632, 7
        %v634 = vsub.s32 %v631, %v633
        %v635 = vrot.slane %v543, %v634
        %v637 = vunpack.c.l.s4 1983009808
        %v638 = vunpack.c.0.s8 %v637
        %v639 = vlaneseq
        %v640 = vshrl.u32 %v639, 7
        %v641 = vsub.s32 %v638, %v640
        %v642 = vrot.slane %v628, %v641
        %v643 = vcombine.low %v620, %v635
        %v644 = vcombine.high %v620, %v635
        %v646 = vunpack.c.l.s4 1934713408
        %v647 = vunpack.c.0.s8 %v646
        %v648 = vlaneseq
        %v649 = vshrl.u32 %v648, 7
        %v650 = vsub.s32 %v647, %v649
        %v651 = vrot.slane %v643, %v650
        %v653 = vunpack.c.l.s4 1934713408
        %v654 = vunpack.c.0.s8 %v653
        %v655 = vlaneseq
        %v656 = vshrl.u32 %v655, 7
        %v657 = vsub.s32 %v654, %v656
        %v658 = vrot.slane %v644, %v657
        %v659 = vcombine.low %v627, %v642
        %v660 = vcombine.high %v627, %v642
        %v662 = vunpack.c.l.s4 1934713408
        %v663 = vunpack.c.0.s8 %v662
        %v664 = vlaneseq
        %v665 = vshrl.u32 %v664, 7
        %v666 = vsub.s32 %v663, %v665
        %v667 = vrot.slane %v659, %v666
        %v668 = vcombine.high %v651, 0
        %v669 = vcombine.high %v658, 0
        %v670 = vcombine.high %v667, 0
        %v672 = vunpack.c.l.s4 1934713408
        %v673 = vunpack.c.0.s8 %v672
        %v674 = vlaneseq
        %v675 = vshrl.u32 %v674, 7
        %v676 = vsub.s32 %v673, %v675
        %v677 = vrot.slane %v660, %v676
        %v680 = vpack.i.b16 %v651, %v586
        %v681 = vshrl.u32 %v586, 16
        %v682 = vshrl.u32 %v651, 16
        %v683 = vpack.i.b16 %v682, %v681
        %v686 = vpack.i.b16 %v668, %v603
        %v687 = vshrl.u32 %v603, 16
        %v688 = vshrl.u32 %v668, 16
        %v689 = vpack.i.b16 %v688, %v687
        %v692 = vpack.i.b16 %v658, %v593
        %v693 = vshrl.u32 %v593, 16
        %v694 = vshrl.u32 %v658, 16
        %v695 = vpack.i.b16 %v694, %v693
        %v698 = vpack.i.b16 %v669, %v604
        %v699 = vshrl.u32 %v604, 16
        %v700 = vshrl.u32 %v669, 16
        %v701 = vpack.i.b16 %v700, %v699
        %v704 = vpack.i.b16 %v667, %v602
        %v705 = vshrl.u32 %v602, 16
        %v706 = vshrl.u32 %v667, 16
        %v707 = vpack.i.b16 %v706, %v705
        %v710 = vpack.i.b16 %v670, %v605
        %v711 = vshrl.u32 %v605, 16
        %v712 = vshrl.u32 %v670, 16
        %v713 = vpack.i.b16 %v712, %v711
        %v716 = vpack.i.b16 %v677, %v612
        %v717 = vshrl.u32 %v612, 16
        %v718 = vshrl.u32 %v677, 16
        %v719 = vpack.i.b16 %v718, %v717
        %720 = vrot.lane.b32.xlu0 %v683, 14
        %v721 = vpop.permute.xlu0 %720
        %722 = vrot.lane.b32.xlu0 %v686, 28
        %v723 = vpop.permute.xlu0 %722
        %724 = vrot.lane.b32.xlu0 %v689, 42
        %v725 = vpop.permute.xlu0 %724
        %726 = vrot.lane.b32.xlu0 %v692, 56
        %v727 = vpop.permute.xlu0 %726
        %728 = vrot.lane.b32.xlu0 %v695, 70
        %v729 = vpop.permute.xlu0 %728
        %730 = vrot.lane.b32.xlu0 %v698, 84
        %v731 = vpop.permute.xlu0 %730
        %732 = vrot.lane.b32.xlu0 %v701, 98
        %v733 = vpop.permute.xlu0 %732
        %734 = vrot.lane.b32.xlu0 %v704, 112
        %v735 = vpop.permute.xlu0 %734
        %736 = vrot.lane.b32.xlu0 %v707, 126
        %v737 = vpop.permute.xlu0 %736
        %738 = vrot.lane.b32.xlu0 %v710, 12
        %v739 = vpop.permute.xlu0 %738
        %740 = vrot.lane.b32.xlu0 %v713, 26
        %v741 = vpop.permute.xlu0 %740
        %742 = vrot.lane.b32.xlu0 %v716, 40
        %v743 = vpop.permute.xlu0 %742
        %744 = vrot.lane.b32.xlu0 %v719, 54
        %v745 = vpop.permute.xlu0 %744
        %v748 = vsel %vm492, %v680, %v721
        %v750 = vsel %vm496, %v748, %v723
        %v752 = vsel %vm499, %v750, %v725
        %v754 = vsel %vm502, %v752, %v727
        %v756 = vsel %vm505, %v754, %v729
        %v758 = vsel %vm508, %v756, %v731
        %v760 = vsel %vm511, %v758, %v733
        %v762 = vsel %vm514, %v760, %v735
        %v764 = vsel %vm517, %v762, %v737
        %v766 = vsel %vm520, %v737, %v739
        %v768 = vsel %vm523, %v766, %v741
        %v770 = vsel %vm526, %v768, %v743
        %v772 = vsel %vm529, %v770, %v745
        %773 = vrot.lane.b32.xlu0 %v290, 126
        %v774 = vpop.permute.xlu0 %773
        %775 = vrot.lane.b32.xlu0 %v291, 126
        %v776 = vpop.permute.xlu0 %775
        %777 = vrot.lane.b32.xlu0 %v292, 126
        %v778 = vpop.permute.xlu0 %777
        %779 = vrot.lane.b32.xlu0 %v293, 126
        %v780 = vpop.permute.xlu0 %779
        %v785 = vcombine.high %v774, 0
        %v787 = vunpack.c.l.s4 1983009808
        %v788 = vunpack.c.0.s8 %v787
        %v789 = vlaneseq
        %v790 = vshrl.u32 %v789, 7
        %v791 = vsub.s32 %v788, %v790
        %v792 = vrot.slane %v774, %v791
        %v794 = vunpack.c.l.s4 1983009808
        %v795 = vunpack.c.0.s8 %v794
        %v796 = vlaneseq
        %v797 = vshrl.u32 %v796, 7
        %v798 = vsub.s32 %v795, %v797
        %v799 = vrot.slane %v785, %v798
        %v800 = vcombine.high %v778, 0
        %v802 = vunpack.c.l.s4 1983009808
        %v803 = vunpack.c.0.s8 %v802
        %v804 = vlaneseq
        %v805 = vshrl.u32 %v804, 7
        %v806 = vsub.s32 %v803, %v805
        %v807 = vrot.slane %v778, %v806
        %v809 = vunpack.c.l.s4 1983009808
        %v810 = vunpack.c.0.s8 %v809
        %v811 = vlaneseq
        %v812 = vshrl.u32 %v811, 7
        %v813 = vsub.s32 %v810, %v812
        %v814 = vrot.slane %v800, %v813
        %v815 = vcombine.low %v792, %v807
        %v816 = vcombine.high %v792, %v807
        %v818 = vunpack.c.l.s4 1934713408
        %v819 = vunpack.c.0.s8 %v818
        %v820 = vlaneseq
        %v821 = vshrl.u32 %v820, 7
        %v822 = vsub.s32 %v819, %v821
        %v823 = vrot.slane %v815, %v822
        %v825 = vunpack.c.l.s4 1934713408
        %v826 = vunpack.c.0.s8 %v825
        %v827 = vlaneseq
        %v828 = vshrl.u32 %v827, 7
        %v829 = vsub.s32 %v826, %v828
        %v830 = vrot.slane %v816, %v829
        %v831 = vcombine.low %v799, %v814
        %v832 = vcombine.high %v799, %v814
        %v834 = vunpack.c.l.s4 1934713408
        %v835 = vunpack.c.0.s8 %v834
        %v836 = vlaneseq
        %v837 = vshrl.u32 %v836, 7
        %v838 = vsub.s32 %v835, %v837
        %v839 = vrot.slane %v831, %v838
        %v840 = vcombine.high %v823, 0
        %v841 = vcombine.high %v830, 0
        %v842 = vcombine.high %v839, 0
        %v844 = vunpack.c.l.s4 1934713408
        %v845 = vunpack.c.0.s8 %v844
        %v846 = vlaneseq
        %v847 = vshrl.u32 %v846, 7
        %v848 = vsub.s32 %v845, %v847
        %v849 = vrot.slane %v832, %v848
        %v850 = vcombine.high %v776, 0
        %v852 = vunpack.c.l.s4 1983009808
        %v853 = vunpack.c.0.s8 %v852
        %v854 = vlaneseq
        %v855 = vshrl.u32 %v854, 7
        %v856 = vsub.s32 %v853, %v855
        %v857 = vrot.slane %v776, %v856
        %v859 = vunpack.c.l.s4 1983009808
        %v860 = vunpack.c.0.s8 %v859
        %v861 = vlaneseq
        %v862 = vshrl.u32 %v861, 7
        %v863 = vsub.s32 %v860, %v862
        %v864 = vrot.slane %v850, %v863
        %v865 = vcombine.high %v780, 0
        %v867 = vunpack.c.l.s4 1983009808
        %v868 = vunpack.c.0.s8 %v867
        %v869 = vlaneseq
        %v870 = vshrl.u32 %v869, 7
        %v871 = vsub.s32 %v868, %v870
        %v872 = vrot.slane %v780, %v871
        %v874 = vunpack.c.l.s4 1983009808
        %v875 = vunpack.c.0.s8 %v874
        %v876 = vlaneseq
        %v877 = vshrl.u32 %v876, 7
        %v878 = vsub.s32 %v875, %v877
        %v879 = vrot.slane %v865, %v878
        %v880 = vcombine.low %v857, %v872
        %v881 = vcombine.high %v857, %v872
        %v883 = vunpack.c.l.s4 1934713408
        %v884 = vunpack.c.0.s8 %v883
        %v885 = vlaneseq
        %v886 = vshrl.u32 %v885, 7
        %v887 = vsub.s32 %v884, %v886
        %v888 = vrot.slane %v880, %v887
        %v890 = vunpack.c.l.s4 1934713408
        %v891 = vunpack.c.0.s8 %v890
        %v892 = vlaneseq
        %v893 = vshrl.u32 %v892, 7
        %v894 = vsub.s32 %v891, %v893
        %v895 = vrot.slane %v881, %v894
        %v896 = vcombine.low %v864, %v879
        %v897 = vcombine.high %v864, %v879
        %v899 = vunpack.c.l.s4 1934713408
        %v900 = vunpack.c.0.s8 %v899
        %v901 = vlaneseq
        %v902 = vshrl.u32 %v901, 7
        %v903 = vsub.s32 %v900, %v902
        %v904 = vrot.slane %v896, %v903
        %v905 = vcombine.high %v888, 0
        %v906 = vcombine.high %v895, 0
        %v907 = vcombine.high %v904, 0
        %v909 = vunpack.c.l.s4 1934713408
        %v910 = vunpack.c.0.s8 %v909
        %v911 = vlaneseq
        %v912 = vshrl.u32 %v911, 7
        %v913 = vsub.s32 %v910, %v912
        %v914 = vrot.slane %v897, %v913
        %v917 = vpack.i.b16 %v888, %v823
        %v918 = vshrl.u32 %v823, 16
        %v919 = vshrl.u32 %v888, 16
        %v920 = vpack.i.b16 %v919, %v918
        %v923 = vpack.i.b16 %v905, %v840
        %v924 = vshrl.u32 %v840, 16
        %v925 = vshrl.u32 %v905, 16
        %v926 = vpack.i.b16 %v925, %v924
        %v929 = vpack.i.b16 %v895, %v830
        %v930 = vshrl.u32 %v830, 16
        %v931 = vshrl.u32 %v895, 16
        %v932 = vpack.i.b16 %v931, %v930
        %v935 = vpack.i.b16 %v906, %v841
        %v936 = vshrl.u32 %v841, 16
        %v937 = vshrl.u32 %v906, 16
        %v938 = vpack.i.b16 %v937, %v936
        %v941 = vpack.i.b16 %v904, %v839
        %v942 = vshrl.u32 %v839, 16
        %v943 = vshrl.u32 %v904, 16
        %v944 = vpack.i.b16 %v943, %v942
        %v947 = vpack.i.b16 %v907, %v842
        %v948 = vshrl.u32 %v842, 16
        %v949 = vshrl.u32 %v907, 16
        %v950 = vpack.i.b16 %v949, %v948
        %v953 = vpack.i.b16 %v914, %v849
        %v954 = vshrl.u32 %v849, 16
        %v955 = vshrl.u32 %v914, 16
        %v956 = vpack.i.b16 %v955, %v954
        %957 = vrot.lane.b32.xlu0 %v920, 14
        %v958 = vpop.permute.xlu0 %957
        %959 = vrot.lane.b32.xlu0 %v923, 28
        %v960 = vpop.permute.xlu0 %959
        %961 = vrot.lane.b32.xlu0 %v926, 42
        %v962 = vpop.permute.xlu0 %961
        %963 = vrot.lane.b32.xlu0 %v929, 56
        %v964 = vpop.permute.xlu0 %963
        %965 = vrot.lane.b32.xlu0 %v932, 70
        %v966 = vpop.permute.xlu0 %965
        %967 = vrot.lane.b32.xlu0 %v935, 84
        %v968 = vpop.permute.xlu0 %967
        %969 = vrot.lane.b32.xlu0 %v938, 98
        %v970 = vpop.permute.xlu0 %969
        %971 = vrot.lane.b32.xlu0 %v941, 112
        %v972 = vpop.permute.xlu0 %971
        %973 = vrot.lane.b32.xlu0 %v944, 126
        %v974 = vpop.permute.xlu0 %973
        %975 = vrot.lane.b32.xlu0 %v947, 12
        %v976 = vpop.permute.xlu0 %975
        %977 = vrot.lane.b32.xlu0 %v950, 26
        %v978 = vpop.permute.xlu0 %977
        %979 = vrot.lane.b32.xlu0 %v953, 40
        %v980 = vpop.permute.xlu0 %979
        %981 = vrot.lane.b32.xlu0 %v956, 54
        %v982 = vpop.permute.xlu0 %981
        %v985 = vsel %vm492, %v917, %v958
        %v987 = vsel %vm496, %v985, %v960
        %v989 = vsel %vm499, %v987, %v962
        %v991 = vsel %vm502, %v989, %v964
        %v993 = vsel %vm505, %v991, %v966
        %v995 = vsel %vm508, %v993, %v968
        %v997 = vsel %vm511, %v995, %v970
        %v999 = vsel %vm514, %v997, %v972
        %v1001 = vsel %vm517, %v999, %v974
        %v1003 = vsel %vm520, %v974, %v976
        %v1005 = vsel %vm523, %v1003, %v978
        %v1007 = vsel %vm526, %v1005, %v980
        %v1009 = vsel %vm529, %v1007, %v982
        %v1011 = vshrl.u32 %v290, 16
        %v1013 = vshll.u32 %v290, 16
        %v1015 = vrot.slane %v1013, 1
        %v1016 = vor.u32 %v1011, %v1015
        %v1018 = vshrl.u32 %v291, 16
        %v1020 = vshll.u32 %v291, 16
        %v1022 = vrot.slane %v1020, 1
        %v1023 = vor.u32 %v1018, %v1022
        %v1025 = vshrl.u32 %v292, 16
        %v1027 = vshll.u32 %v292, 16
        %v1029 = vrot.slane %v1027, 1
        %v1030 = vor.u32 %v1025, %v1029
        %v1032 = vshrl.u32 %v293, 16
        %v1034 = vshll.u32 %v293, 16
        %v1036 = vrot.slane %v1034, 1
        %v1037 = vor.u32 %v1032, %v1036
        %v1042 = vcombine.high %v1016, 0
        %v1044 = vunpack.c.l.s4 1983009808
        %v1045 = vunpack.c.0.s8 %v1044
        %v1046 = vlaneseq
        %v1047 = vshrl.u32 %v1046, 7
        %v1048 = vsub.s32 %v1045, %v1047
        %v1049 = vrot.slane %v1016, %v1048
        %v1051 = vunpack.c.l.s4 1983009808
        %v1052 = vunpack.c.0.s8 %v1051
        %v1053 = vlaneseq
        %v1054 = vshrl.u32 %v1053, 7
        %v1055 = vsub.s32 %v1052, %v1054
        %v1056 = vrot.slane %v1042, %v1055
        %v1057 = vcombine.high %v1030, 0
        %v1059 = vunpack.c.l.s4 1983009808
        %v1060 = vunpack.c.0.s8 %v1059
        %v1061 = vlaneseq
        %v1062 = vshrl.u32 %v1061, 7
        %v1063 = vsub.s32 %v1060, %v1062
        %v1064 = vrot.slane %v1030, %v1063
        %v1066 = vunpack.c.l.s4 1983009808
        %v1067 = vunpack.c.0.s8 %v1066
        %v1068 = vlaneseq
        %v1069 = vshrl.u32 %v1068, 7
        %v1070 = vsub.s32 %v1067, %v1069
        %v1071 = vrot.slane %v1057, %v1070
        %v1072 = vcombine.low %v1049, %v1064
        %v1073 = vcombine.high %v1049, %v1064
        %v1075 = vunpack.c.l.s4 1934713408
        %v1076 = vunpack.c.0.s8 %v1075
        %v1077 = vlaneseq
        %v1078 = vshrl.u32 %v1077, 7
        %v1079 = vsub.s32 %v1076, %v1078
        %v1080 = vrot.slane %v1072, %v1079
        %v1082 = vunpack.c.l.s4 1934713408
        %v1083 = vunpack.c.0.s8 %v1082
        %v1084 = vlaneseq
        %v1085 = vshrl.u32 %v1084, 7
        %v1086 = vsub.s32 %v1083, %v1085
        %v1087 = vrot.slane %v1073, %v1086
        %v1088 = vcombine.low %v1056, %v1071
        %v1089 = vcombine.high %v1056, %v1071
        %v1091 = vunpack.c.l.s4 1934713408
        %v1092 = vunpack.c.0.s8 %v1091
        %v1093 = vlaneseq
        %v1094 = vshrl.u32 %v1093, 7
        %v1095 = vsub.s32 %v1092, %v1094
        %v1096 = vrot.slane %v1088, %v1095
        %v1097 = vcombine.high %v1080, 0
        %v1098 = vcombine.high %v1087, 0
        %v1099 = vcombine.high %v1096, 0
        %v1101 = vunpack.c.l.s4 1934713408
        %v1102 = vunpack.c.0.s8 %v1101
        %v1103 = vlaneseq
        %v1104 = vshrl.u32 %v1103, 7
        %v1105 = vsub.s32 %v1102, %v1104
        %v1106 = vrot.slane %v1089, %v1105
        %v1107 = vcombine.high %v1023, 0
        %v1109 = vunpack.c.l.s4 1983009808
        %v1110 = vunpack.c.0.s8 %v1109
        %v1111 = vlaneseq
        %v1112 = vshrl.u32 %v1111, 7
        %v1113 = vsub.s32 %v1110, %v1112
        %v1114 = vrot.slane %v1023, %v1113
        %v1116 = vunpack.c.l.s4 1983009808
        %v1117 = vunpack.c.0.s8 %v1116
        %v1118 = vlaneseq
        %v1119 = vshrl.u32 %v1118, 7
        %v1120 = vsub.s32 %v1117, %v1119
        %v1121 = vrot.slane %v1107, %v1120
        %v1122 = vcombine.high %v1037, 0
        %v1124 = vunpack.c.l.s4 1983009808
        %v1125 = vunpack.c.0.s8 %v1124
        %v1126 = vlaneseq
        %v1127 = vshrl.u32 %v1126, 7
        %v1128 = vsub.s32 %v1125, %v1127
        %v1129 = vrot.slane %v1037, %v1128
        %v1131 = vunpack.c.l.s4 1983009808
        %v1132 = vunpack.c.0.s8 %v1131
        %v1133 = vlaneseq
        %v1134 = vshrl.u32 %v1133, 7
        %v1135 = vsub.s32 %v1132, %v1134
        %v1136 = vrot.slane %v1122, %v1135
        %v1137 = vcombine.low %v1114, %v1129
        %v1138 = vcombine.high %v1114, %v1129
        %v1140 = vunpack.c.l.s4 1934713408
        %v1141 = vunpack.c.0.s8 %v1140
        %v1142 = vlaneseq
        %v1143 = vshrl.u32 %v1142, 7
        %v1144 = vsub.s32 %v1141, %v1143
        %v1145 = vrot.slane %v1137, %v1144
        %v1147 = vunpack.c.l.s4 1934713408
        %v1148 = vunpack.c.0.s8 %v1147
        %v1149 = vlaneseq
        %v1150 = vshrl.u32 %v1149, 7
        %v1151 = vsub.s32 %v1148, %v1150
        %v1152 = vrot.slane %v1138, %v1151
        %v1153 = vcombine.low %v1121, %v1136
        %v1154 = vcombine.high %v1121, %v1136
        %v1156 = vunpack.c.l.s4 1934713408
        %v1157 = vunpack.c.0.s8 %v1156
        %v1158 = vlaneseq
        %v1159 = vshrl.u32 %v1158, 7
        %v1160 = vsub.s32 %v1157, %v1159
        %v1161 = vrot.slane %v1153, %v1160
        %v1162 = vcombine.high %v1145, 0
        %v1163 = vcombine.high %v1152, 0
        %v1164 = vcombine.high %v1161, 0
        %v1166 = vunpack.c.l.s4 1934713408
        %v1167 = vunpack.c.0.s8 %v1166
        %v1168 = vlaneseq
        %v1169 = vshrl.u32 %v1168, 7
        %v1170 = vsub.s32 %v1167, %v1169
        %v1171 = vrot.slane %v1154, %v1170
        %v1174 = vpack.i.b16 %v1145, %v1080
        %v1175 = vshrl.u32 %v1080, 16
        %v1176 = vshrl.u32 %v1145, 16
        %v1177 = vpack.i.b16 %v1176, %v1175
        %v1180 = vpack.i.b16 %v1162, %v1097
        %v1181 = vshrl.u32 %v1097, 16
        %v1182 = vshrl.u32 %v1162, 16
        %v1183 = vpack.i.b16 %v1182, %v1181
        %v1186 = vpack.i.b16 %v1152, %v1087
        %v1187 = vshrl.u32 %v1087, 16
        %v1188 = vshrl.u32 %v1152, 16
        %v1189 = vpack.i.b16 %v1188, %v1187
        %v1192 = vpack.i.b16 %v1163, %v1098
        %v1193 = vshrl.u32 %v1098, 16
        %v1194 = vshrl.u32 %v1163, 16
        %v1195 = vpack.i.b16 %v1194, %v1193
        %v1198 = vpack.i.b16 %v1161, %v1096
        %v1199 = vshrl.u32 %v1096, 16
        %v1200 = vshrl.u32 %v1161, 16
        %v1201 = vpack.i.b16 %v1200, %v1199
        %v1204 = vpack.i.b16 %v1164, %v1099
        %v1205 = vshrl.u32 %v1099, 16
        %v1206 = vshrl.u32 %v1164, 16
        %v1207 = vpack.i.b16 %v1206, %v1205
        %v1210 = vpack.i.b16 %v1171, %v1106
        %v1211 = vshrl.u32 %v1106, 16
        %v1212 = vshrl.u32 %v1171, 16
        %v1213 = vpack.i.b16 %v1212, %v1211
        %1214 = vrot.lane.b32.xlu0 %v1177, 14
        %v1215 = vpop.permute.xlu0 %1214
        %1216 = vrot.lane.b32.xlu0 %v1180, 28
        %v1217 = vpop.permute.xlu0 %1216
        %1218 = vrot.lane.b32.xlu0 %v1183, 42
        %v1219 = vpop.permute.xlu0 %1218
        %1220 = vrot.lane.b32.xlu0 %v1186, 56
        %v1221 = vpop.permute.xlu0 %1220
        %1222 = vrot.lane.b32.xlu0 %v1189, 70
        %v1223 = vpop.permute.xlu0 %1222
        %1224 = vrot.lane.b32.xlu0 %v1192, 84
        %v1225 = vpop.permute.xlu0 %1224
        %1226 = vrot.lane.b32.xlu0 %v1195, 98
        %v1227 = vpop.permute.xlu0 %1226
        %1228 = vrot.lane.b32.xlu0 %v1198, 112
        %v1229 = vpop.permute.xlu0 %1228
        %1230 = vrot.lane.b32.xlu0 %v1201, 126
        %v1231 = vpop.permute.xlu0 %1230
        %1232 = vrot.lane.b32.xlu0 %v1204, 12
        %v1233 = vpop.permute.xlu0 %1232
        %1234 = vrot.lane.b32.xlu0 %v1207, 26
        %v1235 = vpop.permute.xlu0 %1234
        %1236 = vrot.lane.b32.xlu0 %v1210, 40
        %v1237 = vpop.permute.xlu0 %1236
        %1238 = vrot.lane.b32.xlu0 %v1213, 54
        %v1239 = vpop.permute.xlu0 %1238
        %v1242 = vsel %vm492, %v1174, %v1215
        %v1244 = vsel %vm496, %v1242, %v1217
        %v1246 = vsel %vm499, %v1244, %v1219
        %v1248 = vsel %vm502, %v1246, %v1221
        %v1250 = vsel %vm505, %v1248, %v1223
        %v1252 = vsel %vm508, %v1250, %v1225
        %v1254 = vsel %vm511, %v1252, %v1227
        %v1256 = vsel %vm514, %v1254, %v1229
        %v1258 = vsel %vm517, %v1256, %v1231
        %v1260 = vsel %vm520, %v1231, %v1233
        %v1262 = vsel %vm523, %v1260, %v1235
        %v1264 = vsel %vm526, %v1262, %v1237
        %v1266 = vsel %vm529, %v1264, %v1239
        %1267 = vrot.lane.b32.xlu0 %v1016, 127
        %v1268 = vpop.permute.xlu0 %1267
        %1269 = vrot.lane.b32.xlu0 %v1023, 127
        %v1270 = vpop.permute.xlu0 %1269
        %1271 = vrot.lane.b32.xlu0 %v1030, 127
        %v1272 = vpop.permute.xlu0 %1271
        %1273 = vrot.lane.b32.xlu0 %v1037, 127
        %v1274 = vpop.permute.xlu0 %1273
        %v1279 = vcombine.high %v1268, 0
        %v1281 = vunpack.c.l.s4 1983009808
        %v1282 = vunpack.c.0.s8 %v1281
        %v1283 = vlaneseq
        %v1284 = vshrl.u32 %v1283, 7
        %v1285 = vsub.s32 %v1282, %v1284
        %v1286 = vrot.slane %v1268, %v1285
        %v1288 = vunpack.c.l.s4 1983009808
        %v1289 = vunpack.c.0.s8 %v1288
        %v1290 = vlaneseq
        %v1291 = vshrl.u32 %v1290, 7
        %v1292 = vsub.s32 %v1289, %v1291
        %v1293 = vrot.slane %v1279, %v1292
        %v1294 = vcombine.high %v1272, 0
        %v1296 = vunpack.c.l.s4 1983009808
        %v1297 = vunpack.c.0.s8 %v1296
        %v1298 = vlaneseq
        %v1299 = vshrl.u32 %v1298, 7
        %v1300 = vsub.s32 %v1297, %v1299
        %v1301 = vrot.slane %v1272, %v1300
        %v1303 = vunpack.c.l.s4 1983009808
        %v1304 = vunpack.c.0.s8 %v1303
        %v1305 = vlaneseq
        %v1306 = vshrl.u32 %v1305, 7
        %v1307 = vsub.s32 %v1304, %v1306
        %v1308 = vrot.slane %v1294, %v1307
        %v1309 = vcombine.low %v1286, %v1301
        %v1310 = vcombine.high %v1286, %v1301
        %v1312 = vunpack.c.l.s4 1934713408
        %v1313 = vunpack.c.0.s8 %v1312
        %v1314 = vlaneseq
        %v1315 = vshrl.u32 %v1314, 7
        %v1316 = vsub.s32 %v1313, %v1315
        %v1317 = vrot.slane %v1309, %v1316
        %v1319 = vunpack.c.l.s4 1934713408
        %v1320 = vunpack.c.0.s8 %v1319
        %v1321 = vlaneseq
        %v1322 = vshrl.u32 %v1321, 7
        %v1323 = vsub.s32 %v1320, %v1322
        %v1324 = vrot.slane %v1310, %v1323
        %v1325 = vcombine.low %v1293, %v1308
        %v1326 = vcombine.high %v1293, %v1308
        %v1328 = vunpack.c.l.s4 1934713408
        %v1329 = vunpack.c.0.s8 %v1328
        %v1330 = vlaneseq
        %v1331 = vshrl.u32 %v1330, 7
        %v1332 = vsub.s32 %v1329, %v1331
        %v1333 = vrot.slane %v1325, %v1332
        %v1334 = vcombine.high %v1317, 0
        %v1335 = vcombine.high %v1324, 0
        %v1336 = vcombine.high %v1333, 0
        %v1338 = vunpack.c.l.s4 1934713408
        %v1339 = vunpack.c.0.s8 %v1338
        %v1340 = vlaneseq
        %v1341 = vshrl.u32 %v1340, 7
        %v1342 = vsub.s32 %v1339, %v1341
        %v1343 = vrot.slane %v1326, %v1342
        %v1344 = vcombine.high %v1270, 0
        %v1346 = vunpack.c.l.s4 1983009808
        %v1347 = vunpack.c.0.s8 %v1346
        %v1348 = vlaneseq
        %v1349 = vshrl.u32 %v1348, 7
        %v1350 = vsub.s32 %v1347, %v1349
        %v1351 = vrot.slane %v1270, %v1350
        %v1353 = vunpack.c.l.s4 1983009808
        %v1354 = vunpack.c.0.s8 %v1353
        %v1355 = vlaneseq
        %v1356 = vshrl.u32 %v1355, 7
        %v1357 = vsub.s32 %v1354, %v1356
        %v1358 = vrot.slane %v1344, %v1357
        %v1359 = vcombine.high %v1274, 0
        %v1361 = vunpack.c.l.s4 1983009808
        %v1362 = vunpack.c.0.s8 %v1361
        %v1363 = vlaneseq
        %v1364 = vshrl.u32 %v1363, 7
        %v1365 = vsub.s32 %v1362, %v1364
        %v1366 = vrot.slane %v1274, %v1365
        %v1368 = vunpack.c.l.s4 1983009808
        %v1369 = vunpack.c.0.s8 %v1368
        %v1370 = vlaneseq
        %v1371 = vshrl.u32 %v1370, 7
        %v1372 = vsub.s32 %v1369, %v1371
        %v1373 = vrot.slane %v1359, %v1372
        %v1374 = vcombine.low %v1351, %v1366
        %v1375 = vcombine.high %v1351, %v1366
        %v1377 = vunpack.c.l.s4 1934713408
        %v1378 = vunpack.c.0.s8 %v1377
        %v1379 = vlaneseq
        %v1380 = vshrl.u32 %v1379, 7
        %v1381 = vsub.s32 %v1378, %v1380
        %v1382 = vrot.slane %v1374, %v1381
        %v1384 = vunpack.c.l.s4 1934713408
        %v1385 = vunpack.c.0.s8 %v1384
        %v1386 = vlaneseq
        %v1387 = vshrl.u32 %v1386, 7
        %v1388 = vsub.s32 %v1385, %v1387
        %v1389 = vrot.slane %v1375, %v1388
        %v1390 = vcombine.low %v1358, %v1373
        %v1391 = vcombine.high %v1358, %v1373
        %v1393 = vunpack.c.l.s4 1934713408
        %v1394 = vunpack.c.0.s8 %v1393
        %v1395 = vlaneseq
        %v1396 = vshrl.u32 %v1395, 7
        %v1397 = vsub.s32 %v1394, %v1396
        %v1398 = vrot.slane %v1390, %v1397
        %v1399 = vcombine.high %v1382, 0
        %v1400 = vcombine.high %v1389, 0
        %v1401 = vcombine.high %v1398, 0
        %v1403 = vunpack.c.l.s4 1934713408
        %v1404 = vunpack.c.0.s8 %v1403
        %v1405 = vlaneseq
        %v1406 = vshrl.u32 %v1405, 7
        %v1407 = vsub.s32 %v1404, %v1406
        %v1408 = vrot.slane %v1391, %v1407
        %v1411 = vpack.i.b16 %v1382, %v1317
        %v1412 = vshrl.u32 %v1317, 16
        %v1413 = vshrl.u32 %v1382, 16
        %v1414 = vpack.i.b16 %v1413, %v1412
        %v1417 = vpack.i.b16 %v1399, %v1334
        %v1418 = vshrl.u32 %v1334, 16
        %v1419 = vshrl.u32 %v1399, 16
        %v1420 = vpack.i.b16 %v1419, %v1418
        %v1423 = vpack.i.b16 %v1389, %v1324
        %v1424 = vshrl.u32 %v1324, 16
        %v1425 = vshrl.u32 %v1389, 16
        %v1426 = vpack.i.b16 %v1425, %v1424
        %v1429 = vpack.i.b16 %v1400, %v1335
        %v1430 = vshrl.u32 %v1335, 16
        %v1431 = vshrl.u32 %v1400, 16
        %v1432 = vpack.i.b16 %v1431, %v1430
        %v1435 = vpack.i.b16 %v1398, %v1333
        %v1436 = vshrl.u32 %v1333, 16
        %v1437 = vshrl.u32 %v1398, 16
        %v1438 = vpack.i.b16 %v1437, %v1436
        %v1441 = vpack.i.b16 %v1401, %v1336
        %v1442 = vshrl.u32 %v1336, 16
        %v1443 = vshrl.u32 %v1401, 16
        %v1444 = vpack.i.b16 %v1443, %v1442
        %v1447 = vpack.i.b16 %v1408, %v1343
        %v1448 = vshrl.u32 %v1343, 16
        %v1449 = vshrl.u32 %v1408, 16
        %v1450 = vpack.i.b16 %v1449, %v1448
        %1451 = vrot.lane.b32.xlu0 %v1414, 14
        %v1452 = vpop.permute.xlu0 %1451
        %1453 = vrot.lane.b32.xlu0 %v1417, 28
        %v1454 = vpop.permute.xlu0 %1453
        %1455 = vrot.lane.b32.xlu0 %v1420, 42
        %v1456 = vpop.permute.xlu0 %1455
        %1457 = vrot.lane.b32.xlu0 %v1423, 56
        %v1458 = vpop.permute.xlu0 %1457
        %1459 = vrot.lane.b32.xlu0 %v1426, 70
        %v1460 = vpop.permute.xlu0 %1459
        %1461 = vrot.lane.b32.xlu0 %v1429, 84
        %v1462 = vpop.permute.xlu0 %1461
        %1463 = vrot.lane.b32.xlu0 %v1432, 98
        %v1464 = vpop.permute.xlu0 %1463
        %1465 = vrot.lane.b32.xlu0 %v1435, 112
        %v1466 = vpop.permute.xlu0 %1465
        %1467 = vrot.lane.b32.xlu0 %v1438, 126
        %v1468 = vpop.permute.xlu0 %1467
        %1469 = vrot.lane.b32.xlu0 %v1441, 12
        %v1470 = vpop.permute.xlu0 %1469
        %1471 = vrot.lane.b32.xlu0 %v1444, 26
        %v1472 = vpop.permute.xlu0 %1471
        %1473 = vrot.lane.b32.xlu0 %v1447, 40
        %v1474 = vpop.permute.xlu0 %1473
        %1475 = vrot.lane.b32.xlu0 %v1450, 54
        %v1476 = vpop.permute.xlu0 %1475
        %v1479 = vsel %vm492, %v1411, %v1452
        %v1481 = vsel %vm496, %v1479, %v1454
        %v1483 = vsel %vm499, %v1481, %v1456
        %v1485 = vsel %vm502, %v1483, %v1458
        %v1487 = vsel %vm505, %v1485, %v1460
        %v1489 = vsel %vm508, %v1487, %v1462
        %v1491 = vsel %vm511, %v1489, %v1464
        %v1493 = vsel %vm514, %v1491, %v1466
        %v1495 = vsel %vm517, %v1493, %v1468
        %v1497 = vsel %vm520, %v1468, %v1470
        %v1499 = vsel %vm523, %v1497, %v1472
        %v1501 = vsel %vm526, %v1499, %v1474
        %v1503 = vsel %vm529, %v1501, %v1476
        %1504 = vrot.lane.b32.xlu0 %v1016, 126
        %v1505 = vpop.permute.xlu0 %1504
        %1506 = vrot.lane.b32.xlu0 %v1023, 126
        %v1507 = vpop.permute.xlu0 %1506
        %1508 = vrot.lane.b32.xlu0 %v1030, 126
        %v1509 = vpop.permute.xlu0 %1508
        %1510 = vrot.lane.b32.xlu0 %v1037, 126
        %v1511 = vpop.permute.xlu0 %1510
        %v1516 = vcombine.high %v1505, 0
        %v1518 = vunpack.c.l.s4 1983009808
        %v1519 = vunpack.c.0.s8 %v1518
        %v1520 = vlaneseq
        %v1521 = vshrl.u32 %v1520, 7
        %v1522 = vsub.s32 %v1519, %v1521
        %v1523 = vrot.slane %v1505, %v1522
        %v1525 = vunpack.c.l.s4 1983009808
        %v1526 = vunpack.c.0.s8 %v1525
        %v1527 = vlaneseq
        %v1528 = vshrl.u32 %v1527, 7
        %v1529 = vsub.s32 %v1526, %v1528
        %v1530 = vrot.slane %v1516, %v1529
        %v1531 = vcombine.high %v1509, 0
        %v1533 = vunpack.c.l.s4 1983009808
        %v1534 = vunpack.c.0.s8 %v1533
        %v1535 = vlaneseq
        %v1536 = vshrl.u32 %v1535, 7
        %v1537 = vsub.s32 %v1534, %v1536
        %v1538 = vrot.slane %v1509, %v1537
        %v1540 = vunpack.c.l.s4 1983009808
        %v1541 = vunpack.c.0.s8 %v1540
        %v1542 = vlaneseq
        %v1543 = vshrl.u32 %v1542, 7
        %v1544 = vsub.s32 %v1541, %v1543
        %v1545 = vrot.slane %v1531, %v1544
        %v1546 = vcombine.low %v1523, %v1538
        %v1547 = vcombine.high %v1523, %v1538
        %v1549 = vunpack.c.l.s4 1934713408
        %v1550 = vunpack.c.0.s8 %v1549
        %v1551 = vlaneseq
        %v1552 = vshrl.u32 %v1551, 7
        %v1553 = vsub.s32 %v1550, %v1552
        %v1554 = vrot.slane %v1546, %v1553
        %v1556 = vunpack.c.l.s4 1934713408
        %v1557 = vunpack.c.0.s8 %v1556
        %v1558 = vlaneseq
        %v1559 = vshrl.u32 %v1558, 7
        %v1560 = vsub.s32 %v1557, %v1559
        %v1561 = vrot.slane %v1547, %v1560
        %v1562 = vcombine.low %v1530, %v1545
        %v1563 = vcombine.high %v1530, %v1545
        %v1565 = vunpack.c.l.s4 1934713408
        %v1566 = vunpack.c.0.s8 %v1565
        %v1567 = vlaneseq
        %v1568 = vshrl.u32 %v1567, 7
        %v1569 = vsub.s32 %v1566, %v1568
        %v1570 = vrot.slane %v1562, %v1569
        %v1571 = vcombine.high %v1554, 0
        %v1572 = vcombine.high %v1561, 0
        %v1573 = vcombine.high %v1570, 0
        %v1575 = vunpack.c.l.s4 1934713408
        %v1576 = vunpack.c.0.s8 %v1575
        %v1577 = vlaneseq
        %v1578 = vshrl.u32 %v1577, 7
        %v1579 = vsub.s32 %v1576, %v1578
        %v1580 = vrot.slane %v1563, %v1579
        %v1581 = vcombine.high %v1507, 0
        %v1583 = vunpack.c.l.s4 1983009808
        %v1584 = vunpack.c.0.s8 %v1583
        %v1585 = vlaneseq
        %v1586 = vshrl.u32 %v1585, 7
        %v1587 = vsub.s32 %v1584, %v1586
        %v1588 = vrot.slane %v1507, %v1587
        %v1590 = vunpack.c.l.s4 1983009808
        %v1591 = vunpack.c.0.s8 %v1590
        %v1592 = vlaneseq
        %v1593 = vshrl.u32 %v1592, 7
        %v1594 = vsub.s32 %v1591, %v1593
        %v1595 = vrot.slane %v1581, %v1594
        %v1596 = vcombine.high %v1511, 0
        %v1598 = vunpack.c.l.s4 1983009808
        %v1599 = vunpack.c.0.s8 %v1598
        %v1600 = vlaneseq
        %v1601 = vshrl.u32 %v1600, 7
        %v1602 = vsub.s32 %v1599, %v1601
        %v1603 = vrot.slane %v1511, %v1602
        %v1605 = vunpack.c.l.s4 1983009808
        %v1606 = vunpack.c.0.s8 %v1605
        %v1607 = vlaneseq
        %v1608 = vshrl.u32 %v1607, 7
        %v1609 = vsub.s32 %v1606, %v1608
        %v1610 = vrot.slane %v1596, %v1609
        %v1611 = vcombine.low %v1588, %v1603
        %v1612 = vcombine.high %v1588, %v1603
        %v1614 = vunpack.c.l.s4 1934713408
        %v1615 = vunpack.c.0.s8 %v1614
        %v1616 = vlaneseq
        %v1617 = vshrl.u32 %v1616, 7
        %v1618 = vsub.s32 %v1615, %v1617
        %v1619 = vrot.slane %v1611, %v1618
        %v1621 = vunpack.c.l.s4 1934713408
        %v1622 = vunpack.c.0.s8 %v1621
        %v1623 = vlaneseq
        %v1624 = vshrl.u32 %v1623, 7
        %v1625 = vsub.s32 %v1622, %v1624
        %v1626 = vrot.slane %v1612, %v1625
        %v1627 = vcombine.low %v1595, %v1610
        %v1628 = vcombine.high %v1595, %v1610
        %v1630 = vunpack.c.l.s4 1934713408
        %v1631 = vunpack.c.0.s8 %v1630
        %v1632 = vlaneseq
        %v1633 = vshrl.u32 %v1632, 7
        %v1634 = vsub.s32 %v1631, %v1633
        %v1635 = vrot.slane %v1627, %v1634
        %v1636 = vcombine.high %v1619, 0
        %v1637 = vcombine.high %v1626, 0
        %v1638 = vcombine.high %v1635, 0
        %v1640 = vunpack.c.l.s4 1934713408
        %v1641 = vunpack.c.0.s8 %v1640
        %v1642 = vlaneseq
        %v1643 = vshrl.u32 %v1642, 7
        %v1644 = vsub.s32 %v1641, %v1643
        %v1645 = vrot.slane %v1628, %v1644
        %v1648 = vpack.i.b16 %v1619, %v1554
        %v1649 = vshrl.u32 %v1554, 16
        %v1650 = vshrl.u32 %v1619, 16
        %v1651 = vpack.i.b16 %v1650, %v1649
        %v1654 = vpack.i.b16 %v1636, %v1571
        %v1655 = vshrl.u32 %v1571, 16
        %v1656 = vshrl.u32 %v1636, 16
        %v1657 = vpack.i.b16 %v1656, %v1655
        %v1660 = vpack.i.b16 %v1626, %v1561
        %v1661 = vshrl.u32 %v1561, 16
        %v1662 = vshrl.u32 %v1626, 16
        %v1663 = vpack.i.b16 %v1662, %v1661
        %v1666 = vpack.i.b16 %v1637, %v1572
        %v1667 = vshrl.u32 %v1572, 16
        %v1668 = vshrl.u32 %v1637, 16
        %v1669 = vpack.i.b16 %v1668, %v1667
        %v1672 = vpack.i.b16 %v1635, %v1570
        %v1673 = vshrl.u32 %v1570, 16
        %v1674 = vshrl.u32 %v1635, 16
        %v1675 = vpack.i.b16 %v1674, %v1673
        %v1678 = vpack.i.b16 %v1638, %v1573
        %v1679 = vshrl.u32 %v1573, 16
        %v1680 = vshrl.u32 %v1638, 16
        %v1681 = vpack.i.b16 %v1680, %v1679
        %v1684 = vpack.i.b16 %v1645, %v1580
        %v1685 = vshrl.u32 %v1580, 16
        %v1686 = vshrl.u32 %v1645, 16
        %v1687 = vpack.i.b16 %v1686, %v1685
        %1688 = vrot.lane.b32.xlu0 %v1651, 14
        %v1689 = vpop.permute.xlu0 %1688
        %1690 = vrot.lane.b32.xlu0 %v1654, 28
        %v1691 = vpop.permute.xlu0 %1690
        %1692 = vrot.lane.b32.xlu0 %v1657, 42
        %v1693 = vpop.permute.xlu0 %1692
        %1694 = vrot.lane.b32.xlu0 %v1660, 56
        %v1695 = vpop.permute.xlu0 %1694
        %1696 = vrot.lane.b32.xlu0 %v1663, 70
        %v1697 = vpop.permute.xlu0 %1696
        %1698 = vrot.lane.b32.xlu0 %v1666, 84
        %v1699 = vpop.permute.xlu0 %1698
        %1700 = vrot.lane.b32.xlu0 %v1669, 98
        %v1701 = vpop.permute.xlu0 %1700
        %1702 = vrot.lane.b32.xlu0 %v1672, 112
        %v1703 = vpop.permute.xlu0 %1702
        %1704 = vrot.lane.b32.xlu0 %v1675, 126
        %v1705 = vpop.permute.xlu0 %1704
        %1706 = vrot.lane.b32.xlu0 %v1678, 12
        %v1707 = vpop.permute.xlu0 %1706
        %1708 = vrot.lane.b32.xlu0 %v1681, 26
        %v1709 = vpop.permute.xlu0 %1708
        %1710 = vrot.lane.b32.xlu0 %v1684, 40
        %v1711 = vpop.permute.xlu0 %1710
        %1712 = vrot.lane.b32.xlu0 %v1687, 54
        %v1713 = vpop.permute.xlu0 %1712
        %v1716 = vsel %vm492, %v1648, %v1689
        %v1718 = vsel %vm496, %v1716, %v1691
        %v1720 = vsel %vm499, %v1718, %v1693
        %v1722 = vsel %vm502, %v1720, %v1695
        %v1724 = vsel %vm505, %v1722, %v1697
        %v1726 = vsel %vm508, %v1724, %v1699
        %v1728 = vsel %vm511, %v1726, %v1701
        %v1730 = vsel %vm514, %v1728, %v1703
        %v1732 = vsel %vm517, %v1730, %v1705
        %v1734 = vsel %vm520, %v1705, %v1707
        %v1736 = vsel %vm523, %v1734, %v1709
        %v1738 = vsel %vm526, %v1736, %v1711
        %v1740 = vsel %vm529, %v1738, %v1713
        %v1741 = vrot.slane %v290, 1
        %v1742 = vrot.slane %v291, 1
        %v1743 = vrot.slane %v292, 1
        %v1744 = vrot.slane %v293, 1
        %v1749 = vcombine.high %v1741, 0
        %v1751 = vunpack.c.l.s4 1983009808
        %v1752 = vunpack.c.0.s8 %v1751
        %v1753 = vlaneseq
        %v1754 = vshrl.u32 %v1753, 7
        %v1755 = vsub.s32 %v1752, %v1754
        %v1756 = vrot.slane %v1741, %v1755
        %v1758 = vunpack.c.l.s4 1983009808
        %v1759 = vunpack.c.0.s8 %v1758
        %v1760 = vlaneseq
        %v1761 = vshrl.u32 %v1760, 7
        %v1762 = vsub.s32 %v1759, %v1761
        %v1763 = vrot.slane %v1749, %v1762
        %v1764 = vcombine.high %v1743, 0
        %v1766 = vunpack.c.l.s4 1983009808
        %v1767 = vunpack.c.0.s8 %v1766
        %v1768 = vlaneseq
        %v1769 = vshrl.u32 %v1768, 7
        %v1770 = vsub.s32 %v1767, %v1769
        %v1771 = vrot.slane %v1743, %v1770
        %v1773 = vunpack.c.l.s4 1983009808
        %v1774 = vunpack.c.0.s8 %v1773
        %v1775 = vlaneseq
        %v1776 = vshrl.u32 %v1775, 7
        %v1777 = vsub.s32 %v1774, %v1776
        %v1778 = vrot.slane %v1764, %v1777
        %v1779 = vcombine.low %v1756, %v1771
        %v1780 = vcombine.high %v1756, %v1771
        %v1782 = vunpack.c.l.s4 1934713408
        %v1783 = vunpack.c.0.s8 %v1782
        %v1784 = vlaneseq
        %v1785 = vshrl.u32 %v1784, 7
        %v1786 = vsub.s32 %v1783, %v1785
        %v1787 = vrot.slane %v1779, %v1786
        %v1789 = vunpack.c.l.s4 1934713408
        %v1790 = vunpack.c.0.s8 %v1789
        %v1791 = vlaneseq
        %v1792 = vshrl.u32 %v1791, 7
        %v1793 = vsub.s32 %v1790, %v1792
        %v1794 = vrot.slane %v1780, %v1793
        %v1795 = vcombine.low %v1763, %v1778
        %v1796 = vcombine.high %v1763, %v1778
        %v1798 = vunpack.c.l.s4 1934713408
        %v1799 = vunpack.c.0.s8 %v1798
        %v1800 = vlaneseq
        %v1801 = vshrl.u32 %v1800, 7
        %v1802 = vsub.s32 %v1799, %v1801
        %v1803 = vrot.slane %v1795, %v1802
        %v1804 = vcombine.high %v1787, 0
        %v1805 = vcombine.high %v1794, 0
        %v1806 = vcombine.high %v1803, 0
        %v1808 = vunpack.c.l.s4 1934713408
        %v1809 = vunpack.c.0.s8 %v1808
        %v1810 = vlaneseq
        %v1811 = vshrl.u32 %v1810, 7
        %v1812 = vsub.s32 %v1809, %v1811
        %v1813 = vrot.slane %v1796, %v1812
        %v1814 = vcombine.high %v1742, 0
        %v1816 = vunpack.c.l.s4 1983009808
        %v1817 = vunpack.c.0.s8 %v1816
        %v1818 = vlaneseq
        %v1819 = vshrl.u32 %v1818, 7
        %v1820 = vsub.s32 %v1817, %v1819
        %v1821 = vrot.slane %v1742, %v1820
        %v1823 = vunpack.c.l.s4 1983009808
        %v1824 = vunpack.c.0.s8 %v1823
        %v1825 = vlaneseq
        %v1826 = vshrl.u32 %v1825, 7
        %v1827 = vsub.s32 %v1824, %v1826
        %v1828 = vrot.slane %v1814, %v1827
        %v1829 = vcombine.high %v1744, 0
        %v1831 = vunpack.c.l.s4 1983009808
        %v1832 = vunpack.c.0.s8 %v1831
        %v1833 = vlaneseq
        %v1834 = vshrl.u32 %v1833, 7
        %v1835 = vsub.s32 %v1832, %v1834
        %v1836 = vrot.slane %v1744, %v1835
        %v1838 = vunpack.c.l.s4 1983009808
        %v1839 = vunpack.c.0.s8 %v1838
        %v1840 = vlaneseq
        %v1841 = vshrl.u32 %v1840, 7
        %v1842 = vsub.s32 %v1839, %v1841
        %v1843 = vrot.slane %v1829, %v1842
        %v1844 = vcombine.low %v1821, %v1836
        %v1845 = vcombine.high %v1821, %v1836
        %v1847 = vunpack.c.l.s4 1934713408
        %v1848 = vunpack.c.0.s8 %v1847
        %v1849 = vlaneseq
        %v1850 = vshrl.u32 %v1849, 7
        %v1851 = vsub.s32 %v1848, %v1850
        %v1852 = vrot.slane %v1844, %v1851
        %v1854 = vunpack.c.l.s4 1934713408
        %v1855 = vunpack.c.0.s8 %v1854
        %v1856 = vlaneseq
        %v1857 = vshrl.u32 %v1856, 7
        %v1858 = vsub.s32 %v1855, %v1857
        %v1859 = vrot.slane %v1845, %v1858
        %v1860 = vcombine.low %v1828, %v1843
        %v1861 = vcombine.high %v1828, %v1843
        %v1863 = vunpack.c.l.s4 1934713408
        %v1864 = vunpack.c.0.s8 %v1863
        %v1865 = vlaneseq
        %v1866 = vshrl.u32 %v1865, 7
        %v1867 = vsub.s32 %v1864, %v1866
        %v1868 = vrot.slane %v1860, %v1867
        %v1869 = vcombine.high %v1852, 0
        %v1870 = vcombine.high %v1859, 0
        %v1871 = vcombine.high %v1868, 0
        %v1873 = vunpack.c.l.s4 1934713408
        %v1874 = vunpack.c.0.s8 %v1873
        %v1875 = vlaneseq
        %v1876 = vshrl.u32 %v1875, 7
        %v1877 = vsub.s32 %v1874, %v1876
        %v1878 = vrot.slane %v1861, %v1877
        %v1881 = vpack.i.b16 %v1852, %v1787
        %v1882 = vshrl.u32 %v1787, 16
        %v1883 = vshrl.u32 %v1852, 16
        %v1884 = vpack.i.b16 %v1883, %v1882
        %v1887 = vpack.i.b16 %v1869, %v1804
        %v1888 = vshrl.u32 %v1804, 16
        %v1889 = vshrl.u32 %v1869, 16
        %v1890 = vpack.i.b16 %v1889, %v1888
        %v1893 = vpack.i.b16 %v1859, %v1794
        %v1894 = vshrl.u32 %v1794, 16
        %v1895 = vshrl.u32 %v1859, 16
        %v1896 = vpack.i.b16 %v1895, %v1894
        %v1899 = vpack.i.b16 %v1870, %v1805
        %v1900 = vshrl.u32 %v1805, 16
        %v1901 = vshrl.u32 %v1870, 16
        %v1902 = vpack.i.b16 %v1901, %v1900
        %v1905 = vpack.i.b16 %v1868, %v1803
        %v1906 = vshrl.u32 %v1803, 16
        %v1907 = vshrl.u32 %v1868, 16
        %v1908 = vpack.i.b16 %v1907, %v1906
        %v1911 = vpack.i.b16 %v1871, %v1806
        %v1912 = vshrl.u32 %v1806, 16
        %v1913 = vshrl.u32 %v1871, 16
        %v1914 = vpack.i.b16 %v1913, %v1912
        %v1917 = vpack.i.b16 %v1878, %v1813
        %v1918 = vshrl.u32 %v1813, 16
        %v1919 = vshrl.u32 %v1878, 16
        %v1920 = vpack.i.b16 %v1919, %v1918
        %1921 = vrot.lane.b32.xlu0 %v1884, 14
        %v1922 = vpop.permute.xlu0 %1921
        %1923 = vrot.lane.b32.xlu0 %v1887, 28
        %v1924 = vpop.permute.xlu0 %1923
        %1925 = vrot.lane.b32.xlu0 %v1890, 42
        %v1926 = vpop.permute.xlu0 %1925
        %1927 = vrot.lane.b32.xlu0 %v1893, 56
        %v1928 = vpop.permute.xlu0 %1927
        %1929 = vrot.lane.b32.xlu0 %v1896, 70
        %v1930 = vpop.permute.xlu0 %1929
        %1931 = vrot.lane.b32.xlu0 %v1899, 84
        %v1932 = vpop.permute.xlu0 %1931
        %1933 = vrot.lane.b32.xlu0 %v1902, 98
        %v1934 = vpop.permute.xlu0 %1933
        %1935 = vrot.lane.b32.xlu0 %v1905, 112
        %v1936 = vpop.permute.xlu0 %1935
        %1937 = vrot.lane.b32.xlu0 %v1908, 126
        %v1938 = vpop.permute.xlu0 %1937
        %1939 = vrot.lane.b32.xlu0 %v1911, 12
        %v1940 = vpop.permute.xlu0 %1939
        %1941 = vrot.lane.b32.xlu0 %v1914, 26
        %v1942 = vpop.permute.xlu0 %1941
        %1943 = vrot.lane.b32.xlu0 %v1917, 40
        %v1944 = vpop.permute.xlu0 %1943
        %1945 = vrot.lane.b32.xlu0 %v1920, 54
        %v1946 = vpop.permute.xlu0 %1945
        %v1949 = vsel %vm492, %v1881, %v1922
        %v1951 = vsel %vm496, %v1949, %v1924
        %v1953 = vsel %vm499, %v1951, %v1926
        %v1955 = vsel %vm502, %v1953, %v1928
        %v1957 = vsel %vm505, %v1955, %v1930
        %v1959 = vsel %vm508, %v1957, %v1932
        %v1961 = vsel %vm511, %v1959, %v1934
        %v1963 = vsel %vm514, %v1961, %v1936
        %v1965 = vsel %vm517, %v1963, %v1938
        %v1967 = vsel %vm520, %v1938, %v1940
        %v1969 = vsel %vm523, %v1967, %v1942
        %v1971 = vsel %vm526, %v1969, %v1944
        %v1973 = vsel %vm529, %v1971, %v1946
        %1974 = vrot.lane.b32.xlu0 %v1741, 127
        %v1975 = vpop.permute.xlu0 %1974
        %1976 = vrot.lane.b32.xlu0 %v1742, 127
        %v1977 = vpop.permute.xlu0 %1976
        %1978 = vrot.lane.b32.xlu0 %v1743, 127
        %v1979 = vpop.permute.xlu0 %1978
        %1980 = vrot.lane.b32.xlu0 %v1744, 127
        %v1981 = vpop.permute.xlu0 %1980
        %v1986 = vcombine.high %v1975, 0
        %v1988 = vunpack.c.l.s4 1983009808
        %v1989 = vunpack.c.0.s8 %v1988
        %v1990 = vlaneseq
        %v1991 = vshrl.u32 %v1990, 7
        %v1992 = vsub.s32 %v1989, %v1991
        %v1993 = vrot.slane %v1975, %v1992
        %v1995 = vunpack.c.l.s4 1983009808
        %v1996 = vunpack.c.0.s8 %v1995
        %v1997 = vlaneseq
        %v1998 = vshrl.u32 %v1997, 7
        %v1999 = vsub.s32 %v1996, %v1998
        %v2000 = vrot.slane %v1986, %v1999
        %v2001 = vcombine.high %v1979, 0
        %v2003 = vunpack.c.l.s4 1983009808
        %v2004 = vunpack.c.0.s8 %v2003
        %v2005 = vlaneseq
        %v2006 = vshrl.u32 %v2005, 7
        %v2007 = vsub.s32 %v2004, %v2006
        %v2008 = vrot.slane %v1979, %v2007
        %v2010 = vunpack.c.l.s4 1983009808
        %v2011 = vunpack.c.0.s8 %v2010
        %v2012 = vlaneseq
        %v2013 = vshrl.u32 %v2012, 7
        %v2014 = vsub.s32 %v2011, %v2013
        %v2015 = vrot.slane %v2001, %v2014
        %v2016 = vcombine.low %v1993, %v2008
        %v2017 = vcombine.high %v1993, %v2008
        %v2019 = vunpack.c.l.s4 1934713408
        %v2020 = vunpack.c.0.s8 %v2019
        %v2021 = vlaneseq
        %v2022 = vshrl.u32 %v2021, 7
        %v2023 = vsub.s32 %v2020, %v2022
        %v2024 = vrot.slane %v2016, %v2023
        %v2026 = vunpack.c.l.s4 1934713408
        %v2027 = vunpack.c.0.s8 %v2026
        %v2028 = vlaneseq
        %v2029 = vshrl.u32 %v2028, 7
        %v2030 = vsub.s32 %v2027, %v2029
        %v2031 = vrot.slane %v2017, %v2030
        %v2032 = vcombine.low %v2000, %v2015
        %v2033 = vcombine.high %v2000, %v2015
        %v2035 = vunpack.c.l.s4 1934713408
        %v2036 = vunpack.c.0.s8 %v2035
        %v2037 = vlaneseq
        %v2038 = vshrl.u32 %v2037, 7
        %v2039 = vsub.s32 %v2036, %v2038
        %v2040 = vrot.slane %v2032, %v2039
        %v2041 = vcombine.high %v2024, 0
        %v2042 = vcombine.high %v2031, 0
        %v2043 = vcombine.high %v2040, 0
        %v2045 = vunpack.c.l.s4 1934713408
        %v2046 = vunpack.c.0.s8 %v2045
        %v2047 = vlaneseq
        %v2048 = vshrl.u32 %v2047, 7
        %v2049 = vsub.s32 %v2046, %v2048
        %v2050 = vrot.slane %v2033, %v2049
        %v2051 = vcombine.high %v1977, 0
        %v2053 = vunpack.c.l.s4 1983009808
        %v2054 = vunpack.c.0.s8 %v2053
        %v2055 = vlaneseq
        %v2056 = vshrl.u32 %v2055, 7
        %v2057 = vsub.s32 %v2054, %v2056
        %v2058 = vrot.slane %v1977, %v2057
        %v2060 = vunpack.c.l.s4 1983009808
        %v2061 = vunpack.c.0.s8 %v2060
        %v2062 = vlaneseq
        %v2063 = vshrl.u32 %v2062, 7
        %v2064 = vsub.s32 %v2061, %v2063
        %v2065 = vrot.slane %v2051, %v2064
        %v2066 = vcombine.high %v1981, 0
        %v2068 = vunpack.c.l.s4 1983009808
        %v2069 = vunpack.c.0.s8 %v2068
        %v2070 = vlaneseq
        %v2071 = vshrl.u32 %v2070, 7
        %v2072 = vsub.s32 %v2069, %v2071
        %v2073 = vrot.slane %v1981, %v2072
        %v2075 = vunpack.c.l.s4 1983009808
        %v2076 = vunpack.c.0.s8 %v2075
        %v2077 = vlaneseq
        %v2078 = vshrl.u32 %v2077, 7
        %v2079 = vsub.s32 %v2076, %v2078
        %v2080 = vrot.slane %v2066, %v2079
        %v2081 = vcombine.low %v2058, %v2073
        %v2082 = vcombine.high %v2058, %v2073
        %v2084 = vunpack.c.l.s4 1934713408
        %v2085 = vunpack.c.0.s8 %v2084
        %v2086 = vlaneseq
        %v2087 = vshrl.u32 %v2086, 7
        %v2088 = vsub.s32 %v2085, %v2087
        %v2089 = vrot.slane %v2081, %v2088
        %v2091 = vunpack.c.l.s4 1934713408
        %v2092 = vunpack.c.0.s8 %v2091
        %v2093 = vlaneseq
        %v2094 = vshrl.u32 %v2093, 7
        %v2095 = vsub.s32 %v2092, %v2094
        %v2096 = vrot.slane %v2082, %v2095
        %v2097 = vcombine.low %v2065, %v2080
        %v2098 = vcombine.high %v2065, %v2080
        %v2100 = vunpack.c.l.s4 1934713408
        %v2101 = vunpack.c.0.s8 %v2100
        %v2102 = vlaneseq
        %v2103 = vshrl.u32 %v2102, 7
        %v2104 = vsub.s32 %v2101, %v2103
        %v2105 = vrot.slane %v2097, %v2104
        %v2106 = vcombine.high %v2089, 0
        %v2107 = vcombine.high %v2096, 0
        %v2108 = vcombine.high %v2105, 0
        %v2110 = vunpack.c.l.s4 1934713408
        %v2111 = vunpack.c.0.s8 %v2110
        %v2112 = vlaneseq
        %v2113 = vshrl.u32 %v2112, 7
        %v2114 = vsub.s32 %v2111, %v2113
        %v2115 = vrot.slane %v2098, %v2114
        %v2118 = vpack.i.b16 %v2089, %v2024
        %v2119 = vshrl.u32 %v2024, 16
        %v2120 = vshrl.u32 %v2089, 16
        %v2121 = vpack.i.b16 %v2120, %v2119
        %v2124 = vpack.i.b16 %v2106, %v2041
        %v2125 = vshrl.u32 %v2041, 16
        %v2126 = vshrl.u32 %v2106, 16
        %v2127 = vpack.i.b16 %v2126, %v2125
        %v2130 = vpack.i.b16 %v2096, %v2031
        %v2131 = vshrl.u32 %v2031, 16
        %v2132 = vshrl.u32 %v2096, 16
        %v2133 = vpack.i.b16 %v2132, %v2131
        %v2136 = vpack.i.b16 %v2107, %v2042
        %v2137 = vshrl.u32 %v2042, 16
        %v2138 = vshrl.u32 %v2107, 16
        %v2139 = vpack.i.b16 %v2138, %v2137
        %v2142 = vpack.i.b16 %v2105, %v2040
        %v2143 = vshrl.u32 %v2040, 16
        %v2144 = vshrl.u32 %v2105, 16
        %v2145 = vpack.i.b16 %v2144, %v2143
        %v2148 = vpack.i.b16 %v2108, %v2043
        %v2149 = vshrl.u32 %v2043, 16
        %v2150 = vshrl.u32 %v2108, 16
        %v2151 = vpack.i.b16 %v2150, %v2149
        %v2154 = vpack.i.b16 %v2115, %v2050
        %v2155 = vshrl.u32 %v2050, 16
        %v2156 = vshrl.u32 %v2115, 16
        %v2157 = vpack.i.b16 %v2156, %v2155
        %2158 = vrot.lane.b32.xlu0 %v2121, 14
        %v2159 = vpop.permute.xlu0 %2158
        %2160 = vrot.lane.b32.xlu0 %v2124, 28
        %v2161 = vpop.permute.xlu0 %2160
        %2162 = vrot.lane.b32.xlu0 %v2127, 42
        %v2163 = vpop.permute.xlu0 %2162
        %2164 = vrot.lane.b32.xlu0 %v2130, 56
        %v2165 = vpop.permute.xlu0 %2164
        %2166 = vrot.lane.b32.xlu0 %v2133, 70
        %v2167 = vpop.permute.xlu0 %2166
        %2168 = vrot.lane.b32.xlu0 %v2136, 84
        %v2169 = vpop.permute.xlu0 %2168
        %2170 = vrot.lane.b32.xlu0 %v2139, 98
        %v2171 = vpop.permute.xlu0 %2170
        %2172 = vrot.lane.b32.xlu0 %v2142, 112
        %v2173 = vpop.permute.xlu0 %2172
        %2174 = vrot.lane.b32.xlu0 %v2145, 126
        %v2175 = vpop.permute.xlu0 %2174
        %2176 = vrot.lane.b32.xlu0 %v2148, 12
        %v2177 = vpop.permute.xlu0 %2176
        %2178 = vrot.lane.b32.xlu0 %v2151, 26
        %v2179 = vpop.permute.xlu0 %2178
        %2180 = vrot.lane.b32.xlu0 %v2154, 40
        %v2181 = vpop.permute.xlu0 %2180
        %2182 = vrot.lane.b32.xlu0 %v2157, 54
        %v2183 = vpop.permute.xlu0 %2182
        %v2186 = vsel %vm492, %v2118, %v2159
        %v2188 = vsel %vm496, %v2186, %v2161
        %v2190 = vsel %vm499, %v2188, %v2163
        %v2192 = vsel %vm502, %v2190, %v2165
        %v2194 = vsel %vm505, %v2192, %v2167
        %v2196 = vsel %vm508, %v2194, %v2169
        %v2198 = vsel %vm511, %v2196, %v2171
        %v2200 = vsel %vm514, %v2198, %v2173
        %v2202 = vsel %vm517, %v2200, %v2175
        %v2204 = vsel %vm520, %v2175, %v2177
        %v2206 = vsel %vm523, %v2204, %v2179
        %v2208 = vsel %vm526, %v2206, %v2181
        %v2210 = vsel %vm529, %v2208, %v2183
        %2211 = vrot.lane.b32.xlu0 %v1741, 126
        %v2212 = vpop.permute.xlu0 %2211
        %2213 = vrot.lane.b32.xlu0 %v1742, 126
        %v2214 = vpop.permute.xlu0 %2213
        %2215 = vrot.lane.b32.xlu0 %v1743, 126
        %v2216 = vpop.permute.xlu0 %2215
        %2217 = vrot.lane.b32.xlu0 %v1744, 126
        %v2218 = vpop.permute.xlu0 %2217
        %v2223 = vcombine.high %v2212, 0
        %v2225 = vunpack.c.l.s4 1983009808
        %v2226 = vunpack.c.0.s8 %v2225
        %v2227 = vlaneseq
        %v2228 = vshrl.u32 %v2227, 7
        %v2229 = vsub.s32 %v2226, %v2228
        %v2230 = vrot.slane %v2212, %v2229
        %v2232 = vunpack.c.l.s4 1983009808
        %v2233 = vunpack.c.0.s8 %v2232
        %v2234 = vlaneseq
        %v2235 = vshrl.u32 %v2234, 7
        %v2236 = vsub.s32 %v2233, %v2235
        %v2237 = vrot.slane %v2223, %v2236
        %v2238 = vcombine.high %v2216, 0
        %v2240 = vunpack.c.l.s4 1983009808
        %v2241 = vunpack.c.0.s8 %v2240
        %v2242 = vlaneseq
        %v2243 = vshrl.u32 %v2242, 7
        %v2244 = vsub.s32 %v2241, %v2243
        %v2245 = vrot.slane %v2216, %v2244
        %v2247 = vunpack.c.l.s4 1983009808
        %v2248 = vunpack.c.0.s8 %v2247
        %v2249 = vlaneseq
        %v2250 = vshrl.u32 %v2249, 7
        %v2251 = vsub.s32 %v2248, %v2250
        %v2252 = vrot.slane %v2238, %v2251
        %v2253 = vcombine.low %v2230, %v2245
        %v2254 = vcombine.high %v2230, %v2245
        %v2256 = vunpack.c.l.s4 1934713408
        %v2257 = vunpack.c.0.s8 %v2256
        %v2258 = vlaneseq
        %v2259 = vshrl.u32 %v2258, 7
        %v2260 = vsub.s32 %v2257, %v2259
        %v2261 = vrot.slane %v2253, %v2260
        %v2263 = vunpack.c.l.s4 1934713408
        %v2264 = vunpack.c.0.s8 %v2263
        %v2265 = vlaneseq
        %v2266 = vshrl.u32 %v2265, 7
        %v2267 = vsub.s32 %v2264, %v2266
        %v2268 = vrot.slane %v2254, %v2267
        %v2269 = vcombine.low %v2237, %v2252
        %v2270 = vcombine.high %v2237, %v2252
        %v2272 = vunpack.c.l.s4 1934713408
        %v2273 = vunpack.c.0.s8 %v2272
        %v2274 = vlaneseq
        %v2275 = vshrl.u32 %v2274, 7
        %v2276 = vsub.s32 %v2273, %v2275
        %v2277 = vrot.slane %v2269, %v2276
        %v2278 = vcombine.high %v2261, 0
        %v2279 = vcombine.high %v2268, 0
        %v2280 = vcombine.high %v2277, 0
        %v2282 = vunpack.c.l.s4 1934713408
        %v2283 = vunpack.c.0.s8 %v2282
        %v2284 = vlaneseq
        %v2285 = vshrl.u32 %v2284, 7
        %v2286 = vsub.s32 %v2283, %v2285
        %v2287 = vrot.slane %v2270, %v2286
        %v2288 = vcombine.high %v2214, 0
        %v2290 = vunpack.c.l.s4 1983009808
        %v2291 = vunpack.c.0.s8 %v2290
        %v2292 = vlaneseq
        %v2293 = vshrl.u32 %v2292, 7
        %v2294 = vsub.s32 %v2291, %v2293
        %v2295 = vrot.slane %v2214, %v2294
        %v2297 = vunpack.c.l.s4 1983009808
        %v2298 = vunpack.c.0.s8 %v2297
        %v2299 = vlaneseq
        %v2300 = vshrl.u32 %v2299, 7
        %v2301 = vsub.s32 %v2298, %v2300
        %v2302 = vrot.slane %v2288, %v2301
        %v2303 = vcombine.high %v2218, 0
        %v2305 = vunpack.c.l.s4 1983009808
        %v2306 = vunpack.c.0.s8 %v2305
        %v2307 = vlaneseq
        %v2308 = vshrl.u32 %v2307, 7
        %v2309 = vsub.s32 %v2306, %v2308
        %v2310 = vrot.slane %v2218, %v2309
        %v2312 = vunpack.c.l.s4 1983009808
        %v2313 = vunpack.c.0.s8 %v2312
        %v2314 = vlaneseq
        %v2315 = vshrl.u32 %v2314, 7
        %v2316 = vsub.s32 %v2313, %v2315
        %v2317 = vrot.slane %v2303, %v2316
        %v2318 = vcombine.low %v2295, %v2310
        %v2319 = vcombine.high %v2295, %v2310
        %v2321 = vunpack.c.l.s4 1934713408
        %v2322 = vunpack.c.0.s8 %v2321
        %v2323 = vlaneseq
        %v2324 = vshrl.u32 %v2323, 7
        %v2325 = vsub.s32 %v2322, %v2324
        %v2326 = vrot.slane %v2318, %v2325
        %v2328 = vunpack.c.l.s4 1934713408
        %v2329 = vunpack.c.0.s8 %v2328
        %v2330 = vlaneseq
        %v2331 = vshrl.u32 %v2330, 7
        %v2332 = vsub.s32 %v2329, %v2331
        %v2333 = vrot.slane %v2319, %v2332
        %v2334 = vcombine.low %v2302, %v2317
        %v2335 = vcombine.high %v2302, %v2317
        %v2337 = vunpack.c.l.s4 1934713408
        %v2338 = vunpack.c.0.s8 %v2337
        %v2339 = vlaneseq
        %v2340 = vshrl.u32 %v2339, 7
        %v2341 = vsub.s32 %v2338, %v2340
        %v2342 = vrot.slane %v2334, %v2341
        %v2343 = vcombine.high %v2326, 0
        %v2344 = vcombine.high %v2333, 0
        %v2345 = vcombine.high %v2342, 0
        %v2347 = vunpack.c.l.s4 1934713408
        %v2348 = vunpack.c.0.s8 %v2347
        %v2349 = vlaneseq
        %v2350 = vshrl.u32 %v2349, 7
        %v2351 = vsub.s32 %v2348, %v2350
        %v2352 = vrot.slane %v2335, %v2351
        %v2355 = vpack.i.b16 %v2326, %v2261
        %v2356 = vshrl.u32 %v2261, 16
        %v2357 = vshrl.u32 %v2326, 16
        %v2358 = vpack.i.b16 %v2357, %v2356
        %v2361 = vpack.i.b16 %v2343, %v2278
        %v2362 = vshrl.u32 %v2278, 16
        %v2363 = vshrl.u32 %v2343, 16
        %v2364 = vpack.i.b16 %v2363, %v2362
        %v2367 = vpack.i.b16 %v2333, %v2268
        %v2368 = vshrl.u32 %v2268, 16
        %v2369 = vshrl.u32 %v2333, 16
        %v2370 = vpack.i.b16 %v2369, %v2368
        %v2373 = vpack.i.b16 %v2344, %v2279
        %v2374 = vshrl.u32 %v2279, 16
        %v2375 = vshrl.u32 %v2344, 16
        %v2376 = vpack.i.b16 %v2375, %v2374
        %v2379 = vpack.i.b16 %v2342, %v2277
        %v2380 = vshrl.u32 %v2277, 16
        %v2381 = vshrl.u32 %v2342, 16
        %v2382 = vpack.i.b16 %v2381, %v2380
        %v2385 = vpack.i.b16 %v2345, %v2280
        %v2386 = vshrl.u32 %v2280, 16
        %v2387 = vshrl.u32 %v2345, 16
        %v2388 = vpack.i.b16 %v2387, %v2386
        %v2391 = vpack.i.b16 %v2352, %v2287
        %v2392 = vshrl.u32 %v2287, 16
        %v2393 = vshrl.u32 %v2352, 16
        %v2394 = vpack.i.b16 %v2393, %v2392
        %2395 = vrot.lane.b32.xlu0 %v2358, 14
        %v2396 = vpop.permute.xlu0 %2395
        %2397 = vrot.lane.b32.xlu0 %v2361, 28
        %v2398 = vpop.permute.xlu0 %2397
        %2399 = vrot.lane.b32.xlu0 %v2364, 42
        %v2400 = vpop.permute.xlu0 %2399
        %2401 = vrot.lane.b32.xlu0 %v2367, 56
        %v2402 = vpop.permute.xlu0 %2401
        %2403 = vrot.lane.b32.xlu0 %v2370, 70
        %v2404 = vpop.permute.xlu0 %2403
        %2405 = vrot.lane.b32.xlu0 %v2373, 84
        %v2406 = vpop.permute.xlu0 %2405
        %2407 = vrot.lane.b32.xlu0 %v2376, 98
        %v2408 = vpop.permute.xlu0 %2407
        %2409 = vrot.lane.b32.xlu0 %v2379, 112
        %v2410 = vpop.permute.xlu0 %2409
        %2411 = vrot.lane.b32.xlu0 %v2382, 126
        %v2412 = vpop.permute.xlu0 %2411
        %2413 = vrot.lane.b32.xlu0 %v2385, 12
        %v2414 = vpop.permute.xlu0 %2413
        %2415 = vrot.lane.b32.xlu0 %v2388, 26
        %v2416 = vpop.permute.xlu0 %2415
        %2417 = vrot.lane.b32.xlu0 %v2391, 40
        %v2418 = vpop.permute.xlu0 %2417
        %2419 = vrot.lane.b32.xlu0 %v2394, 54
        %v2420 = vpop.permute.xlu0 %2419
        %v2423 = vsel %vm492, %v2355, %v2396
        %v2425 = vsel %vm496, %v2423, %v2398
        %v2427 = vsel %vm499, %v2425, %v2400
        %v2429 = vsel %vm502, %v2427, %v2402
        %v2431 = vsel %vm505, %v2429, %v2404
        %v2433 = vsel %vm508, %v2431, %v2406
        %v2435 = vsel %vm511, %v2433, %v2408
        %v2437 = vsel %vm514, %v2435, %v2410
        %v2439 = vsel %vm517, %v2437, %v2412
        %v2441 = vsel %vm520, %v2412, %v2414
        %v2443 = vsel %vm523, %v2441, %v2416
        %v2445 = vsel %vm526, %v2443, %v2418
        %v2447 = vsel %vm529, %v2445, %v2420
        %v2450 = vrot.slane %v764, 6
        %v2451 = vrot.slane %v772, 6
        %v2454 = vrot.slane %v1001, 4
        %v2455 = vrot.slane %v1009, 4
        %v2458 = vrot.slane %v1258, 2
        %v2459 = vrot.slane %v1266, 2
        %v2462 = vrot.slane %v1732, 6
        %v2463 = vrot.slane %v1740, 6
        %v2466 = vrot.slane %v1965, 4
        %v2467 = vrot.slane %v1973, 4
        %v2470 = vrot.slane %v2202, 2
        %v2471 = vrot.slane %v2210, 2
        %vm2472 = vcmask 1041408
        %v2474 = vsel %vm2472, %v519, %v2450
        %v2476 = vsel %vm2472, %v531, %v2451
        %vm2477 = vcmask 1043456
        %v2479 = vsel %vm2477, %v2474, %v2454
        %v2481 = vsel %vm2477, %v2476, %v2455
        %vm2482 = vcmask 1045504
        %v2484 = vsel %vm2482, %v2479, %v2458
        %v2487 = vsel %vm2482, %v2481, %v2459
        %v2490 = vsel %vm2472, %v1495, %v2462
        %v2492 = vsel %vm2472, %v1503, %v2463
        %v2494 = vsel %vm2477, %v2490, %v2466
        %v2496 = vsel %vm2477, %v2492, %v2467
        %v2498 = vsel %vm2482, %v2494, %v2470
        %v2501 = vsel %vm2482, %v2496, %v2471
        %v2503 = vld [vmem:[%s272] sm:$0xf]
        %vm2504 = vcmask 293888
        %v2506 = vsel %vm2504, %v2503, 0
        %v2508 = vsel %vm2472, %v2439, 0
        %v2510 = vsel %vm2472, %v2447, 0
        %2512 = vmatprep.subr.bf16.mxu0 %v2487
        %2513 = vmatpush1.bf16.msra.mxu0 %v2484
        %2514 = vmatprep.subr.bf16.mxu0 %v2501
        %2515 = vmatpush1.bf16.msra.mxu0 %v2498
        %2516 = vmatprep.subr.bf16.mxu0 %v2510
        %2517 = vmatpush1.bf16.msra.mxu0 %v2508
        %2518 = vmatprep.subr.bf16.mxu0 0
        %2519 = vmatpush1.bf16.msra.mxu0 0
        %2520 = vmatprep.subr.bf16.mxu0 0
        %2521 = vmatpush1.bf16.msra.mxu0 0
        %2522 = vmatprep.subr.bf16.mxu0 0
        %2523 = vmatpush1.bf16.msra.mxu0 0
        %2524 = vmatprep.subr.bf16.mxu0 0
        %2525 = vmatpush1.bf16.msra.mxu0 0
        %2526 = vmatprep.subr.bf16.mxu0 0
        %2527 = vmatpush1.bf16.msra.mxu0 0
        %2528 = vmatprep.subr.bf16.mxu0 0
        %2529 = vmatpush1.bf16.msra.mxu0 0
        %2530 = vmatprep.subr.bf16.mxu0 0
        %2531 = vmatpush1.bf16.msra.mxu0 0
        %2532 = vmatprep.subr.bf16.mxu0 0
        %2533 = vmatpush1.bf16.msra.mxu0 0
        %2534 = vmatprep.subr.bf16.mxu0 0
        %2535 = vmatpush1.bf16.msra.mxu0 0
        %2536 = vmatprep.subr.bf16.mxu0 0
        %2537 = vmatpush1.bf16.msra.mxu0 0
        %2538 = vmatprep.subr.bf16.mxu0 0
        %2539 = vmatpush1.bf16.msra.mxu0 0
        %2540 = vmatprep.subr.bf16.mxu0 0
        %2541 = vmatpush1.bf16.msra.mxu0 0
        %2542 = vmatprep.subr.bf16.mxu0 0
        %2543 = vmatpush1.bf16.msra.mxu0 0
        %2544 = vmatprep.mubr.bf16.mxu0 0
        %2545 = vmatmul.mubr.bf16.gmra.mrb[0].mxu0 %v2506
        %v2546 = vpop.f32.mrb[0].mxu0
        %v2547 = vadd.f32 0.0, %v2546
        %v2548 = vpop.f32.mrb[0].mxu0
        %v2549 = vadd.f32 0.0, %v2548
        %v2550 = vpop.f32.mrb[0].mxu0
        %v2551 = vpop.f32.mrb[0].mxu0
        %2552 = vdwg.mxu0
        %v2553 = vld [vmem:[%s276] sm:$0xff]
        %2555 = vset.pattern.permute.xlu0 0
        %2556 = vperm.xlu0 %2555, %v2553
        %v2557 = vpop.permute.xlu0 %2556
        %v2559 = vmul.f32 %v2547, %v2557
        %v2560 = vmul.f32 %v2549, %v2557
        %v2561 = vld [vmem:[%s280] sm:$0xff]
        %2563 = vset.pattern.permute.xlu0 0
        %2564 = vperm.xlu0 %2563, %v2561
        %v2565 = vpop.permute.xlu0 %2564
        %v2567 = vadd.f32 %v2559, %v2565
        %v2568 = vadd.f32 %v2560, %v2565
        %2569 = vst [vmem:[%s268] sm:$0xff] %v2567
        %vm2570 = vcmask 556032
        %2571 = vst.msk [vmem:[%s268 + $0x8] sm:$0xff] %vm2570, %v2568
        %s2572 = sand.u32 %s147, 1
        %s2573 = scalar_lea.sflag [#allocation4], %s2572
        %s2574 = sand.u32 %s147, 1
        %s2575 = smul.addr %s2574, 16
        %s2576 = scalar_lea.vmem [#allocation5], %s2575
        // Predicated region
        $region41: #{tpu_custom_call.1} parent=35 // pred_check
          %p2577 = pneg %p157
        $region42: #{tpu_custom_call.1} parent=35 // pred_check_branch
          %2579 = sbr.rel (%p2577) target = $region44
        $region43: #{tpu_custom_call.1} parent=35 // pred_region
          %s2581 = ssub.s32 256, 256
          %2582 = vsyncadd %s2573, %s2581
          %s2583 = smul.addr %s26, 2
          %s2584 = smul.addr %s25, 2
          %s2585 = sadd.s32 %s2583, %s2584
          %s2586 = smul.addr %s2585, 128
          %s2587 = scalar_lea.hbm %s4, %s2586
          %s2589 = sshll.u32 %s2576, 4
          %s2590 = int_to_ptr.vmem [resolvable:$true] %s2589
          %2592 = dma.vmem_to_hbm [thread:$0]  %s2590, 256, %s2587, %s2573
        $region44: #{tpu_custom_call.1} parent=35 // pred_fallthru
          _
      $region36: #{tpu_custom_call.1} parent=5 // pred_fallthru
        _
      %p2593 = scmp.le.s32.totalorder 2, %s16
      // Predicated region
      $region45: #{tpu_custom_call.1} parent=5 // pred_check
        %p2594 = pneg %p2593
      $region46: #{tpu_custom_call.1} parent=5 // pred_check_branch
        %2596 = sbr.rel (%p2594) target = $region48
      $region47: #{tpu_custom_call.1} parent=5 // pred_region
        %s2597 = ssub.s32 %s16, 2
        // Predicated region
        $region49: #{tpu_custom_call.1} parent=47 // pred_check
          %p2598 = pneg %p163
        $region50: #{tpu_custom_call.1} parent=47 // pred_check_branch
          %2600 = sbr.rel (%p2598) target = $region52
        $region51: #{tpu_custom_call.1} parent=47 // pred_region
          %s2601 = sand.u32 %s148, 1
          %s2602 = scalar_lea.sflag [#allocation4], %s2601
          %s2603 = sand.u32 %s148, 1
          %s2604 = smul.addr %s2603, 16
          %s2605 = scalar_lea.vmem [#allocation5], %s2604
          %2606 = dma.done %s2602, 256
        $region52: #{tpu_custom_call.1} parent=47 // pred_fallthru
          _
      $region48: #{tpu_custom_call.1} parent=5 // pred_fallthru
        _
    $region6: #{tpu_custom_call.1} parent=1 // loop_footer
      %s20 = sadd.s32 1, %s16
    $region7: #{tpu_custom_call.1} parent=1 // loop_footer_branch
      %15 = sbr.rel target = $region3
    $region8: #{tpu_custom_call.1} parent=1 // loop_exit
      _
    %2607 = vsyncpa [#allocation3], 1
    %s2608 = scalar_lea.sflag [#allocation3], 1
    %2609 = vsyncpa %s2608, 1
    %2610 = vsyncpa [#allocation4], 1
    %s2611 = scalar_lea.sflag [#allocation4], 1
    %2612 = vsyncpa %s2611, 1

</llo_original>
